<compile_context>
chip_gen: v5e
topology: v5e:2x2
jax: 0.10.0
libtpu: 0.0.40
codegen_flags: <defaults>
</compile_context>

<pallas_src>
import jax
import jax.numpy as jnp
from jax.experimental import pallas as pl
from jax.experimental.pallas import tpu as pltpu


_VMEM = pl.BlockSpec(memory_space=pltpu.MemorySpace.VMEM)


def _round_up(x, m):
    return ((x + m - 1) // m) * m


# ----------------------------- Pallas kernels ------------------------------ #

def _conv_pool_kernel(p_ref, w_ref, b_ref, o_ref):
    # p: (4, Kp, TM) pool-offset patch matrices, w: (Cout, Kp), b: (Cout, 1)
    # o: (Cout, TM) = max over the 4 pool offsets of relu(w @ p[d] + b)
    w = w_ref[...]
    b = b_ref[...]
    acc = None
    for d in range(4):
        y = jnp.dot(w, p_ref[d], preferred_element_type=jnp.float32) + b
        y = jnp.maximum(y, 0.0)
        acc = y if acc is None else jnp.maximum(acc, y)
    o_ref[...] = acc.astype(o_ref.dtype)


def _mlp_kernel(x_ref, w1_ref, b1_ref, w2_ref, b2_ref, w3_ref, b3_ref, o_ref):
    # Fused fc1 -> relu -> fc2 -> relu -> fc3; weights pre-padded to 128-wide features.
    h = jnp.dot(x_ref[...], w1_ref[...], preferred_element_type=jnp.float32) + b1_ref[...]
    h = jnp.maximum(h, 0.0)
    h = jnp.dot(h, w2_ref[...], preferred_element_type=jnp.float32) + b2_ref[...]
    h = jnp.maximum(h, 0.0)
    y = jnp.dot(h, w3_ref[...], preferred_element_type=jnp.float32) + b3_ref[...]
    o_ref[...] = y[:, :o_ref.shape[1]].astype(o_ref.dtype)


# ------------------------------ Kernel wrappers ----------------------------- #

def conv_relu_pool(x_cnhw, w_pad, b_col, *, kh=5, kw=5, tm=256):
    """Fused valid conv(kh,kw,stride 1) + bias + ReLU + 2x2/2 maxpool.

    x_cnhw: (Cin, N, H, W); w_pad: (Cout, Kp) flat weight in (cin, i, j) order,
    zero-padded along K; b_col: (Cout, 1).  Returns (Cout, N, Hp, Wp).
    """
    Cin, N, H, W = x_cnhw.shape
    Ho, Wo = H - kh + 1, W - kw + 1
    Hp, Wp = Ho // 2, Wo // 2
    K = Cin * kh * kw
    Cout, Kp = w_pad.shape
    M = N * Hp * Wp

    # im2col glue (plain JAX): one patch matrix per 2x2-pool offset so the pool
    # reduction happens inside the kernel on the conv tile already in VMEM.
    # TODO(synk): for large batches, build patches in-kernel via shifted VMEM loads
    # instead of materializing the K-times-inflated patch array in HBM.
    cols = jnp.stack([x_cnhw[:, :, i:i + Ho, j:j + Wo]
                      for i in range(kh) for j in range(kw)], axis=1)
    cols = cols.reshape(K, N, Ho, Wo)
    quads = jnp.stack([cols[:, :, dy::2, dx::2]
                       for dy in range(2) for dx in range(2)], axis=0)
    quads = quads.reshape(4, K, M)
    if Kp > K:                                   # match packed (zero-padded) K
        quads = jnp.pad(quads, ((0, 0), (0, Kp - K), (0, 0)))

    if M <= tm:
        # Tiny spatial extent: single VMEM block, no grid.
        out = pl.pallas_call(
            _conv_pool_kernel,
            out_shape=jax.ShapeDtypeStruct((Cout, M), jnp.float32),
            in_specs=[_VMEM, _VMEM, _VMEM],
            out_specs=_VMEM,
        )(quads, w_pad, b_col)
    else:
        grid = (pl.cdiv(M, tm),)
        out = pl.pallas_call(
            _conv_pool_kernel,
            out_shape=jax.ShapeDtypeStruct((Cout, M), jnp.float32),
            grid_spec=pltpu.PrefetchScalarGridSpec(
                num_scalar_prefetch=0,
                grid=grid,
                in_specs=[pl.BlockSpec((4, Kp, tm), lambda m: (0, 0, m)),
                          pl.BlockSpec((Cout, Kp), lambda m: (0, 0)),
                          pl.BlockSpec((Cout, 1), lambda m: (0, 0))],
                out_specs=pl.BlockSpec((Cout, tm), lambda m: (0, m)),
            ),
            compiler_params=pltpu.CompilerParams(
                dimension_semantics=("parallel",)),
        )(quads, w_pad, b_col)
    return out.reshape(Cout, N, Hp, Wp)


def fused_mlp(x, w1, b1, w2, b2, w3, b3, *, n_out):
    """Single-kernel fc1+fc2+fc3 (weights ~200 KB, trivially VMEM-resident)."""
    n = x.shape[0]
    return pl.pallas_call(
        _mlp_kernel,
        out_shape=jax.ShapeDtypeStruct((n, n_out), jnp.float32),
        in_specs=[_VMEM] * 7,
        out_specs=_VMEM,
    )(x, w1, b1, w2, b2, w3, b3)


# ------------------------------ Net parameters ------------------------------ #

def init_params(key):
    def uniform(key, shape, fan_in):
        bound = 1.0 / jnp.sqrt(fan_in)
        return jax.random.uniform(key, shape, jnp.float32, -bound, bound)

    ks = jax.random.split(key, 10)
    return {
        "conv1_w": uniform(ks[0], (6, 3, 5, 5), 3 * 5 * 5),
        "conv1_b": uniform(ks[1], (6,), 3 * 5 * 5),
        "conv2_w": uniform(ks[2], (16, 6, 5, 5), 6 * 5 * 5),
        "conv2_b": uniform(ks[3], (16,), 6 * 5 * 5),
        "fc1_w": uniform(ks[4], (120, 400), 400),   # PyTorch (out, in)
        "fc1_b": uniform(ks[5], (120,), 400),
        "fc2_w": uniform(ks[6], (84, 120), 120),
        "fc2_b": uniform(ks[7], (84,), 120),
        "fc3_w": uniform(ks[8], (10, 84), 84),
        "fc3_b": uniform(ks[9], (10,), 84),
    }


def pack_params(p):
    """One-time layout packing: flatten/transpose/zero-pad weights for the kernels."""
    def pad2(a, rows, cols):
        return jnp.pad(a, ((0, rows - a.shape[0]), (0, cols - a.shape[1])))

    k1, k2 = 3 * 5 * 5, 6 * 5 * 5
    k1p, k2p = _round_up(k1, 8), _round_up(k2, 8)
    return {
        # Conv weights flattened to (Cout, K) in (cin, kh, kw) order (torch flatten).
        "conv1_w": pad2(p["conv1_w"].reshape(6, k1), 6, k1p),
        "conv1_b": p["conv1_b"].reshape(6, 1),
        "conv2_w": pad2(p["conv2_w"].reshape(16, k2), 16, k2p),
        "conv2_b": p["conv2_b"].reshape(16, 1),
        # FC weights transposed to (in, out) and padded to 128-aligned feature widths.
        "fc1_w": pad2(p["fc1_w"].T, 400, 128),
        "fc1_b": jnp.pad(p["fc1_b"], (0, 128 - 120)).reshape(1, 128),
        "fc2_w": pad2(p["fc2_w"].T, 128, 128),
        "fc2_b": jnp.pad(p["fc2_b"], (0, 128 - 84)).reshape(1, 128),
        "fc3_w": pad2(p["fc3_w"].T, 128, 128),
        "fc3_b": jnp.pad(p["fc3_b"], (0, 128 - 10)).reshape(1, 128),
    }


# ------------------------------- Net forward -------------------------------- #

def net_forward(x_nchw, p):
    # x: (N, 3, 32, 32) float32 (PyTorch NCHW convention).
    x = jnp.transpose(x_nchw, (1, 0, 2, 3))                       # (C, N, H, W)
    x = conv_relu_pool(x, p["conv1_w"], p["conv1_b"])             # (6, N, 14, 14)
    x = conv_relu_pool(x, p["conv2_w"], p["conv2_b"])             # (16, N, 5, 5)
    n = x.shape[1]
    x = x.reshape(16, n, 25).transpose(1, 0, 2).reshape(n, 400)   # torch .view (C,H,W) order
    return fused_mlp(x, p["fc1_w"], p["fc1_b"], p["fc2_w"], p["fc2_b"],
                     p["fc3_w"], p["fc3_b"], n_out=10)            # (N, 10)


if __name__ == "__main__":
    key = jax.random.PRNGKey(0)
    k_param, k_x = jax.random.split(key)
    params = pack_params(init_params(k_param))
    # Forward pass implies 32x32 spatial input (-> 16*5*5 flatten).
    x = jax.random.normal(k_x, (2, 3, 32, 32), dtype=jnp.float32)
    fwd = jax.jit(net_forward)
    out = fwd(x, params)
    jax.block_until_ready(out)
    assert out.shape == (2, 10) and out.dtype == jnp.float32
    print("KERNEL_OK")
</pallas_src>

<mosaic_0001>
module attributes {stable_mosaic.version = 11 : i64} {
  func.func @_conv_pool_kernel(%arg0: i32, %arg1: memref<4x80x256xf32, #tpu.memory_space<vmem>>, %arg2: memref<6x80xf32, #tpu.memory_space<vmem>>, %arg3: memref<6x1xf32, #tpu.memory_space<vmem>>, %arg4: memref<6x256xf32, #tpu.memory_space<vmem>>) attributes {dimension_semantics = [#tpu.dimension_semantics<parallel>], iteration_bounds = array<i64: 2>, scalar_prefetch = 0 : i64, scratch_operands = 0 : i64, tpu.core_type = #tpu.core_type<tc>, window_params = [{transform_indices = @transform_0, window_bounds = array<i64: 4, 80, 256>}, {pipeline_mode = #tpu.pipeline_mode<synchronous>, transform_indices = @transform_1, window_bounds = array<i64: 6, 80>}, {pipeline_mode = #tpu.pipeline_mode<synchronous>, transform_indices = @transform_2, window_bounds = array<i64: 6, 1>}, {transform_indices = @transform_3, window_bounds = array<i64: 6, 256>}]} {
    %c0 = arith.constant 0 : index
    %c0_0 = arith.constant 0 : index
    %0 = vector.load %arg2[%c0, %c0_0] : memref<6x80xf32, #tpu.memory_space<vmem>>, vector<6x80xf32>
    %c0_1 = arith.constant 0 : index
    %c0_2 = arith.constant 0 : index
    %1 = vector.load %arg3[%c0_1, %c0_2] : memref<6x1xf32, #tpu.memory_space<vmem>>, vector<6x1xf32>
    %c0_3 = arith.constant 0 : index
    %c0_4 = arith.constant 0 : index
    %c0_5 = arith.constant 0 : index
    %2 = vector.load %arg1[%c0_3, %c0_4, %c0_5] : memref<4x80x256xf32, #tpu.memory_space<vmem>>, vector<1x80x256xf32>
    %3 = vector.shape_cast %2 : vector<1x80x256xf32> to vector<80x256xf32>
    %cst = arith.constant dense<0.000000e+00> : vector<6x256xf32>
    %4 = tpu.matmul %0, %3, %cst {dimension_numbers = #tpu.dot_dimension_numbers<[1], [0], [0], [1], [0, 0, 1, 1], [], []>} : vector<6x80xf32>, vector<80x256xf32>, vector<6x256xf32> -> vector<6x256xf32>
    %5 = vector.broadcast %1 : vector<6x1xf32> to vector<6x256xf32>
    %6 = arith.addf %4, %5 : vector<6x256xf32>
    %cst_6 = arith.constant 0.000000e+00 : f32
    %7 = vector.broadcast %cst_6 : f32 to vector<6x256xf32>
    %8 = arith.maximumf %6, %7 : vector<6x256xf32>
    %c1 = arith.constant 1 : index
    %c0_7 = arith.constant 0 : index
    %c0_8 = arith.constant 0 : index
    %9 = vector.load %arg1[%c1, %c0_7, %c0_8] : memref<4x80x256xf32, #tpu.memory_space<vmem>>, vector<1x80x256xf32>
    %10 = vector.shape_cast %9 : vector<1x80x256xf32> to vector<80x256xf32>
    %cst_9 = arith.constant dense<0.000000e+00> : vector<6x256xf32>
    %11 = tpu.matmul %0, %10, %cst_9 {dimension_numbers = #tpu.dot_dimension_numbers<[1], [0], [0], [1], [0, 0, 1, 1], [], []>} : vector<6x80xf32>, vector<80x256xf32>, vector<6x256xf32> -> vector<6x256xf32>
    %12 = vector.broadcast %1 : vector<6x1xf32> to vector<6x256xf32>
    %13 = arith.addf %11, %12 : vector<6x256xf32>
    %cst_10 = arith.constant 0.000000e+00 : f32
    %14 = vector.broadcast %cst_10 : f32 to vector<6x256xf32>
    %15 = arith.maximumf %13, %14 : vector<6x256xf32>
    %16 = arith.maximumf %8, %15 : vector<6x256xf32>
    %c2 = arith.constant 2 : index
    %c0_11 = arith.constant 0 : index
    %c0_12 = arith.constant 0 : index
    %17 = vector.load %arg1[%c2, %c0_11, %c0_12] : memref<4x80x256xf32, #tpu.memory_space<vmem>>, vector<1x80x256xf32>
    %18 = vector.shape_cast %17 : vector<1x80x256xf32> to vector<80x256xf32>
    %cst_13 = arith.constant dense<0.000000e+00> : vector<6x256xf32>
    %19 = tpu.matmul %0, %18, %cst_13 {dimension_numbers = #tpu.dot_dimension_numbers<[1], [0], [0], [1], [0, 0, 1, 1], [], []>} : vector<6x80xf32>, vector<80x256xf32>, vector<6x256xf32> -> vector<6x256xf32>
    %20 = vector.broadcast %1 : vector<6x1xf32> to vector<6x256xf32>
    %21 = arith.addf %19, %20 : vector<6x256xf32>
    %cst_14 = arith.constant 0.000000e+00 : f32
    %22 = vector.broadcast %cst_14 : f32 to vector<6x256xf32>
    %23 = arith.maximumf %21, %22 : vector<6x256xf32>
    %24 = arith.maximumf %16, %23 : vector<6x256xf32>
    %c3 = arith.constant 3 : index
    %c0_15 = arith.constant 0 : index
    %c0_16 = arith.constant 0 : index
    %25 = vector.load %arg1[%c3, %c0_15, %c0_16] : memref<4x80x256xf32, #tpu.memory_space<vmem>>, vector<1x80x256xf32>
    %26 = vector.shape_cast %25 : vector<1x80x256xf32> to vector<80x256xf32>
    %cst_17 = arith.constant dense<0.000000e+00> : vector<6x256xf32>
    %27 = tpu.matmul %0, %26, %cst_17 {dimension_numbers = #tpu.dot_dimension_numbers<[1], [0], [0], [1], [0, 0, 1, 1], [], []>} : vector<6x80xf32>, vector<80x256xf32>, vector<6x256xf32> -> vector<6x256xf32>
    %28 = vector.broadcast %1 : vector<6x1xf32> to vector<6x256xf32>
    %29 = arith.addf %27, %28 : vector<6x256xf32>
    %cst_18 = arith.constant 0.000000e+00 : f32
    %30 = vector.broadcast %cst_18 : f32 to vector<6x256xf32>
    %31 = arith.maximumf %29, %30 : vector<6x256xf32>
    %32 = arith.maximumf %24, %31 : vector<6x256xf32>
    %c0_19 = arith.constant 0 : index
    %c0_20 = arith.constant 0 : index
    %33 = vector.load %arg4[%c0_19, %c0_20] : memref<6x256xf32, #tpu.memory_space<vmem>>, vector<6x256xf32>
    tpu.vector_store %arg4[%c0_19, %c0_20], %32 {strides = array<i32>} : memref<6x256xf32, #tpu.memory_space<vmem>>, vector<6x256xf32>,
    return
  }
  func.func @transform_0(%arg0: i32) -> (i32, i32, i32) {
    %c0_i32 = arith.constant 0 : i32
    %c0_i32_0 = arith.constant 0 : i32
    %c0_i32_1 = arith.constant 0 : i32
    return %c0_i32, %c0_i32_0, %arg0 : i32, i32, i32
  }
  func.func @transform_1(%arg0: i32) -> (i32, i32) {
    %c0_i32 = arith.constant 0 : i32
    %c0_i32_0 = arith.constant 0 : i32
    %c0_i32_1 = arith.constant 0 : i32
    return %c0_i32, %c0_i32_0 : i32, i32
  }
  func.func @transform_2(%arg0: i32) -> (i32, i32) {
    %c0_i32 = arith.constant 0 : i32
    %c0_i32_0 = arith.constant 0 : i32
    %c0_i32_1 = arith.constant 0 : i32
    return %c0_i32, %c0_i32_0 : i32, i32
  }
  func.func @transform_3(%arg0: i32) -> (i32, i32) {
    %c0_i32 = arith.constant 0 : i32
    %c0_i32_0 = arith.constant 0 : i32
    return %c0_i32, %arg0 : i32, i32
  }
}

module attributes {stable_mosaic.version = 11 : i64} {
  func.func @_conv_pool_kernel(%arg0: memref<4x152x50xf32, #tpu.memory_space<vmem>>, %arg1: memref<16x152xf32, #tpu.memory_space<vmem>>, %arg2: memref<16x1xf32, #tpu.memory_space<vmem>>, %arg3: memref<16x50xf32, #tpu.memory_space<vmem>>) attributes {dimension_semantics = [], scalar_prefetch = 0 : i64, scratch_operands = 0 : i64, tpu.core_type = #tpu.core_type<tc>} {
    %c0 = arith.constant 0 : index
    %c0_0 = arith.constant 0 : index
    %0 = vector.load %arg1[%c0, %c0_0] : memref<16x152xf32, #tpu.memory_space<vmem>>, vector<16x152xf32>
    %c0_1 = arith.constant 0 : index
    %c0_2 = arith.constant 0 : index
    %1 = vector.load %arg2[%c0_1, %c0_2] : memref<16x1xf32, #tpu.memory_space<vmem>>, vector<16x1xf32>
    %c0_3 = arith.constant 0 : index
    %c0_4 = arith.constant 0 : index
    %c0_5 = arith.constant 0 : index
    %2 = vector.load %arg0[%c0_3, %c0_4, %c0_5] : memref<4x152x50xf32, #tpu.memory_space<vmem>>, vector<1x152x50xf32>
    %3 = vector.shape_cast %2 : vector<1x152x50xf32> to vector<152x50xf32>
    %cst = arith.constant dense<0.000000e+00> : vector<16x50xf32>
    %4 = tpu.matmul %0, %3, %cst {dimension_numbers = #tpu.dot_dimension_numbers<[1], [0], [0], [1], [0, 0, 1, 1], [], []>} : vector<16x152xf32>, vector<152x50xf32>, vector<16x50xf32> -> vector<16x50xf32>
    %5 = vector.broadcast %1 : vector<16x1xf32> to vector<16x50xf32>
    %6 = arith.addf %4, %5 : vector<16x50xf32>
    %cst_6 = arith.constant 0.000000e+00 : f32
    %7 = vector.broadcast %cst_6 : f32 to vector<16x50xf32>
    %8 = arith.maximumf %6, %7 : vector<16x50xf32>
    %c1 = arith.constant 1 : index
    %c0_7 = arith.constant 0 : index
    %c0_8 = arith.constant 0 : index
    %9 = vector.load %arg0[%c1, %c0_7, %c0_8] : memref<4x152x50xf32, #tpu.memory_space<vmem>>, vector<1x152x50xf32>
    %10 = vector.shape_cast %9 : vector<1x152x50xf32> to vector<152x50xf32>
    %cst_9 = arith.constant dense<0.000000e+00> : vector<16x50xf32>
    %11 = tpu.matmul %0, %10, %cst_9 {dimension_numbers = #tpu.dot_dimension_numbers<[1], [0], [0], [1], [0, 0, 1, 1], [], []>} : vector<16x152xf32>, vector<152x50xf32>, vector<16x50xf32> -> vector<16x50xf32>
    %12 = vector.broadcast %1 : vector<16x1xf32> to vector<16x50xf32>
    %13 = arith.addf %11, %12 : vector<16x50xf32>
    %cst_10 = arith.constant 0.000000e+00 : f32
    %14 = vector.broadcast %cst_10 : f32 to vector<16x50xf32>
    %15 = arith.maximumf %13, %14 : vector<16x50xf32>
    %16 = arith.maximumf %8, %15 : vector<16x50xf32>
    %c2 = arith.constant 2 : index
    %c0_11 = arith.constant 0 : index
    %c0_12 = arith.constant 0 : index
    %17 = vector.load %arg0[%c2, %c0_11, %c0_12] : memref<4x152x50xf32, #tpu.memory_space<vmem>>, vector<1x152x50xf32>
    %18 = vector.shape_cast %17 : vector<1x152x50xf32> to vector<152x50xf32>
    %cst_13 = arith.constant dense<0.000000e+00> : vector<16x50xf32>
    %19 = tpu.matmul %0, %18, %cst_13 {dimension_numbers = #tpu.dot_dimension_numbers<[1], [0], [0], [1], [0, 0, 1, 1], [], []>} : vector<16x152xf32>, vector<152x50xf32>, vector<16x50xf32> -> vector<16x50xf32>
    %20 = vector.broadcast %1 : vector<16x1xf32> to vector<16x50xf32>
    %21 = arith.addf %19, %20 : vector<16x50xf32>
    %cst_14 = arith.constant 0.000000e+00 : f32
    %22 = vector.broadcast %cst_14 : f32 to vector<16x50xf32>
    %23 = arith.maximumf %21, %22 : vector<16x50xf32>
    %24 = arith.maximumf %16, %23 : vector<16x50xf32>
    %c3 = arith.constant 3 : index
    %c0_15 = arith.constant 0 : index
    %c0_16 = arith.constant 0 : index
    %25 = vector.load %arg0[%c3, %c0_15, %c0_16] : memref<4x152x50xf32, #tpu.memory_space<vmem>>, vector<1x152x50xf32>
    %26 = vector.shape_cast %25 : vector<1x152x50xf32> to vector<152x50xf32>
    %cst_17 = arith.constant dense<0.000000e+00> : vector<16x50xf32>
    %27 = tpu.matmul %0, %26, %cst_17 {dimension_numbers = #tpu.dot_dimension_numbers<[1], [0], [0], [1], [0, 0, 1, 1], [], []>} : vector<16x152xf32>, vector<152x50xf32>, vector<16x50xf32> -> vector<16x50xf32>
    %28 = vector.broadcast %1 : vector<16x1xf32> to vector<16x50xf32>
    %29 = arith.addf %27, %28 : vector<16x50xf32>
    %cst_18 = arith.constant 0.000000e+00 : f32
    %30 = vector.broadcast %cst_18 : f32 to vector<16x50xf32>
    %31 = arith.maximumf %29, %30 : vector<16x50xf32>
    %32 = arith.maximumf %24, %31 : vector<16x50xf32>
    %c0_19 = arith.constant 0 : index
    %c0_20 = arith.constant 0 : index
    %33 = vector.load %arg3[%c0_19, %c0_20] : memref<16x50xf32, #tpu.memory_space<vmem>>, vector<16x50xf32>
    tpu.vector_store %arg3[%c0_19, %c0_20], %32 {strides = array<i32>} : memref<16x50xf32, #tpu.memory_space<vmem>>, vector<16x50xf32>,
    return
  }
}

module attributes {stable_mosaic.version = 11 : i64} {
  func.func @_mlp_kernel(%arg0: memref<2x400xf32, #tpu.memory_space<vmem>>, %arg1: memref<400x128xf32, #tpu.memory_space<vmem>>, %arg2: memref<1x128xf32, #tpu.memory_space<vmem>>, %arg3: memref<128x128xf32, #tpu.memory_space<vmem>>, %arg4: memref<1x128xf32, #tpu.memory_space<vmem>>, %arg5: memref<128x128xf32, #tpu.memory_space<vmem>>, %arg6: memref<1x128xf32, #tpu.memory_space<vmem>>, %arg7: memref<2x10xf32, #tpu.memory_space<vmem>>) attributes {dimension_semantics = [], scalar_prefetch = 0 : i64, scratch_operands = 0 : i64, tpu.core_type = #tpu.core_type<tc>} {
    %c0 = arith.constant 0 : index
    %c0_0 = arith.constant 0 : index
    %0 = vector.load %arg0[%c0, %c0_0] : memref<2x400xf32, #tpu.memory_space<vmem>>, vector<2x400xf32>
    %c0_1 = arith.constant 0 : index
    %c0_2 = arith.constant 0 : index
    %1 = vector.load %arg1[%c0_1, %c0_2] : memref<400x128xf32, #tpu.memory_space<vmem>>, vector<400x128xf32>
    %cst = arith.constant dense<0.000000e+00> : vector<2x128xf32>
    %2 = tpu.matmul %0, %1, %cst {dimension_numbers = #tpu.dot_dimension_numbers<[1], [0], [0], [1], [0, 0, 1, 1], [], []>} : vector<2x400xf32>, vector<400x128xf32>, vector<2x128xf32> -> vector<2x128xf32>
    %c0_3 = arith.constant 0 : index
    %c0_4 = arith.constant 0 : index
    %3 = vector.load %arg2[%c0_3, %c0_4] : memref<1x128xf32, #tpu.memory_space<vmem>>, vector<1x128xf32>
    %4 = vector.broadcast %3 : vector<1x128xf32> to vector<2x128xf32>
    %5 = arith.addf %2, %4 : vector<2x128xf32>
    %cst_5 = arith.constant 0.000000e+00 : f32
    %6 = vector.broadcast %cst_5 : f32 to vector<2x128xf32>
    %7 = arith.maximumf %5, %6 : vector<2x128xf32>
    %c0_6 = arith.constant 0 : index
    %c0_7 = arith.constant 0 : index
    %8 = vector.load %arg3[%c0_6, %c0_7] : memref<128x128xf32, #tpu.memory_space<vmem>>, vector<128x128xf32>
    %cst_8 = arith.constant dense<0.000000e+00> : vector<2x128xf32>
    %9 = tpu.matmul %7, %8, %cst_8 {dimension_numbers = #tpu.dot_dimension_numbers<[1], [0], [0], [1], [0, 0, 1, 1], [], []>} : vector<2x128xf32>, vector<128x128xf32>, vector<2x128xf32> -> vector<2x128xf32>
    %c0_9 = arith.constant 0 : index
    %c0_10 = arith.constant 0 : index
    %10 = vector.load %arg4[%c0_9, %c0_10] : memref<1x128xf32, #tpu.memory_space<vmem>>, vector<1x128xf32>
    %11 = vector.broadcast %10 : vector<1x128xf32> to vector<2x128xf32>
    %12 = arith.addf %9, %11 : vector<2x128xf32>
    %cst_11 = arith.constant 0.000000e+00 : f32
    %13 = vector.broadcast %cst_11 : f32 to vector<2x128xf32>
    %14 = arith.maximumf %12, %13 : vector<2x128xf32>
    %c0_12 = arith.constant 0 : index
    %c0_13 = arith.constant 0 : index
    %15 = vector.load %arg5[%c0_12, %c0_13] : memref<128x128xf32, #tpu.memory_space<vmem>>, vector<128x128xf32>
    %cst_14 = arith.constant dense<0.000000e+00> : vector<2x128xf32>
    %16 = tpu.matmul %14, %15, %cst_14 {dimension_numbers = #tpu.dot_dimension_numbers<[1], [0], [0], [1], [0, 0, 1, 1], [], []>} : vector<2x128xf32>, vector<128x128xf32>, vector<2x128xf32> -> vector<2x128xf32>
    %c0_15 = arith.constant 0 : index
    %c0_16 = arith.constant 0 : index
    %17 = vector.load %arg6[%c0_15, %c0_16] : memref<1x128xf32, #tpu.memory_space<vmem>>, vector<1x128xf32>
    %18 = vector.broadcast %17 : vector<1x128xf32> to vector<2x128xf32>
    %19 = arith.addf %16, %18 : vector<2x128xf32>
    %20 = vector.extract_strided_slice %19 {offsets = [0, 0], sizes = [2, 10], strides = [1, 1]} : vector<2x128xf32> to vector<2x10xf32>
    %c0_17 = arith.constant 0 : index
    %c0_18 = arith.constant 0 : index
    %21 = vector.load %arg7[%c0_17, %c0_18] : memref<2x10xf32, #tpu.memory_space<vmem>>, vector<2x10xf32>
    tpu.vector_store %arg7[%c0_17, %c0_18], %20 {strides = array<i32>} : memref<2x10xf32, #tpu.memory_space<vmem>>, vector<2x10xf32>,
    return
  }
}

</mosaic_0001>

<llo_original>
// kernel: net_forward.3
$region0: #{net_forward.3}
  #allocation0 [shape = 'u32[]', space=smem, size = 0x4, offset = 0x4, fixed_abs, tag = 'smem constant byte address 0x4 - core index']
  #allocation1 [shape = 'u32[72,128]{1,0:T(1,128)}', space=vmem, size = 0x9000, scoped, tag = 'internal scratch']
  %s0 = inlined_call_operand.vmem [shape: f32[4,80,392], index: 0, kind: input, shape index: {}]
  %s1 = inlined_call_operand.vmem [shape: f32[6,80], index: 1, kind: input, shape index: {}]
  %s2 = inlined_call_operand.vmem [shape: f32[6,1], index: 2, kind: input, shape index: {}]
  %s3 = inlined_call_operand.vmem [shape: f32[6,392], index: 3, kind: output, shape index: {}]
  %s4 = sld [smem:[#allocation0]]
  $region68: #{net_forward.3} parent=0
    _
  %s6 = ssub.s32 1, %s4
  %s7 = scalar_select 0, %s6, %s4
  $region1: #{net_forward.3} parent=0
    #allocation2 [shape = 'u8[655360]{0}', space=vmem, size = 0xa0000, scoped, tag = 'input window, operand 0']
    loop: start=0, step=1, limit=4
    $region2: #{net_forward.3} parent=1 // loop_pre_header
      _
    $region3: #{net_forward.3} parent=1 // loop_header
      %s9 = sphi 0, %s13
      %p10 = scmp.ge.s32.totalorder %s9, 4
      %s19 = sphi 0, %s21
      %s22 = sphi 0, %s19
      %s23 = sphi 0, %s22
      %s39 = sphi 0, %s23
      %s43 = sphi 0, %s43
      %s45 = sphi 0, %s43
      %s46 = sphi 0, %s45
      %s60 = sphi 0, %s46
      %s64 = sphi 0, %s64
      %s66 = sphi 0, %s64
      %s67 = sphi 0, %s66
      %s81 = sphi 0, %s67
      %s87 = sphi 0, %s89
      %s90 = sphi 0, %s87
      %s91 = sphi 0, %s90
      %s107 = sphi 0, %s91
    $region4: #{net_forward.3} parent=1 // loop_header_branch
      %12 = sbr.rel (%p10) target = $region8
    $region5: #{net_forward.3} parent=1 // loop_body
      %s14 = ssub.s32 %s9, 1
      %s15 = ssub.s32 %s9, 2
      %s16 = sadd.s32 %s9, 1
      %s17 = ssub.s32 %s9, %s16
      %p18 = scmp.eq.s32.totalorder %s17, 0
      %s20 = sadd.s32 %s19, 1
      %s21 = scalar_select %p18, %s19, %s20
      %p24 = pneg %p18
      %p25 = scmp.eq.s32.totalorder %s9, 1
      %p26 = por %p24, %p25
      %p27 = scmp.ne.s32.totalorder %s19, %s22
      %p28 = scmp.eq.s32.totalorder %s9, 0
      %p29 = por %p27, %p28
      %p30 = scmp.ne.s32.totalorder %s19, %s22
      %p31 = scmp.eq.s32.totalorder %s14, 1
      %p32 = por %p30, %p31
      %p33 = scmp.ne.s32.totalorder %s22, %s23
      %p34 = scmp.eq.s32.totalorder %s14, 0
      %p35 = por %p33, %p34
      %p36 = scmp.ne.s32.totalorder %s22, %s23
      %p37 = scmp.eq.s32.totalorder %s15, 1
      %p38 = por %p36, %p37
      %p40 = scmp.ne.s32.totalorder %s23, %s39
      %p41 = scmp.eq.s32.totalorder %s15, 0
      %p42 = por %p40, %p41
      %s44 = sadd.s32 %s43, 1
      %p47 = scmp.eq.s32.totalorder %s9, 1
      %p48 = scmp.ne.s32.totalorder %s43, %s45
      %p49 = scmp.eq.s32.totalorder %s9, 0
      %p50 = por %p48, %p49
      %p51 = scmp.ne.s32.totalorder %s43, %s45
      %p52 = scmp.eq.s32.totalorder %s14, 1
      %p53 = por %p51, %p52
      %p54 = scmp.ne.s32.totalorder %s45, %s46
      %p55 = scmp.eq.s32.totalorder %s14, 0
      %p56 = por %p54, %p55
      %p57 = scmp.ne.s32.totalorder %s45, %s46
      %p58 = scmp.eq.s32.totalorder %s15, 1
      %p59 = por %p57, %p58
      %p61 = scmp.ne.s32.totalorder %s46, %s60
      %p62 = scmp.eq.s32.totalorder %s15, 0
      %p63 = por %p61, %p62
      %s65 = sadd.s32 %s64, 1
      %p68 = scmp.eq.s32.totalorder %s9, 1
      %p69 = scmp.ne.s32.totalorder %s64, %s66
      %p70 = scmp.eq.s32.totalorder %s9, 0
      %p71 = por %p69, %p70
      %p72 = scmp.ne.s32.totalorder %s64, %s66
      %p73 = scmp.eq.s32.totalorder %s14, 1
      %p74 = por %p72, %p73
      %p75 = scmp.ne.s32.totalorder %s66, %s67
      %p76 = scmp.eq.s32.totalorder %s14, 0
      %p77 = por %p75, %p76
      %p78 = scmp.ne.s32.totalorder %s66, %s67
      %p79 = scmp.eq.s32.totalorder %s15, 1
      %p80 = por %p78, %p79
      %p82 = scmp.ne.s32.totalorder %s67, %s81
      %p83 = scmp.eq.s32.totalorder %s15, 0
      %p84 = por %p82, %p83
      %s85 = ssub.s32 %s9, %s16
      %p86 = scmp.eq.s32.totalorder %s85, 0
      %s88 = sadd.s32 %s87, 1
      %s89 = scalar_select %p86, %s87, %s88
      %p92 = pneg %p86
      %p93 = scmp.eq.s32.totalorder %s9, 1
      %p94 = por %p92, %p93
      %p95 = scmp.ne.s32.totalorder %s87, %s90
      %p96 = scmp.eq.s32.totalorder %s9, 0
      %p97 = por %p95, %p96
      %p98 = scmp.ne.s32.totalorder %s87, %s90
      %p99 = scmp.eq.s32.totalorder %s14, 1
      %p100 = por %p98, %p99
      %p101 = scmp.ne.s32.totalorder %s90, %s91
      %p102 = scmp.eq.s32.totalorder %s14, 0
      %p103 = por %p101, %p102
      %p104 = scmp.ne.s32.totalorder %s90, %s91
      %p105 = scmp.eq.s32.totalorder %s15, 1
      %p106 = por %p104, %p105
      %p108 = scmp.ne.s32.totalorder %s91, %s107
      %p109 = scmp.eq.s32.totalorder %s15, 0
      %p110 = por %p108, %p109
      %p111 = scmp.le.s32.totalorder 1, %s9
      %p112 = scmp.lt.s32.totalorder %s9, 3
      %p113 = pnand %p111, %p112
      %p114 = pneg %p113
      // Predicated region
      $region9: #{net_forward.3} parent=5 // pred_check
        _
      $region10: #{net_forward.3} parent=5 // pred_check_branch
        %116 = sbr.rel (%p113) target = $region12
      $region11: #{net_forward.3} parent=5 // pred_region
        %s117 = ssub.s32 %s9, 1
        // Predicated region
        $region13: #{net_forward.3} parent=11 // pred_check
          %p118 = pneg %p56
        $region14: #{net_forward.3} parent=11 // pred_check_branch
          %120 = sbr.rel (%p118) target = $region16
        $region15: #{net_forward.3} parent=11 // pred_region
          _
        $region16: #{net_forward.3} parent=11 // pred_fallthru
          _
        // Predicated region
        $region17: #{net_forward.3} parent=11 // pred_check
          %p121 = pneg %p77
        $region18: #{net_forward.3} parent=11 // pred_check_branch
          %123 = sbr.rel (%p121) target = $region20
        $region19: #{net_forward.3} parent=11 // pred_region
          _
        $region20: #{net_forward.3} parent=11 // pred_fallthru
          _
      $region12: #{net_forward.3} parent=5 // pred_fallthru
        _
      %p124 = scmp.lt.s32.totalorder %s9, 2
      // Predicated region
      $region21: #{net_forward.3} parent=5 // pred_check
        %p125 = pneg %p124
      $region22: #{net_forward.3} parent=5 // pred_check_branch
        %127 = sbr.rel (%p125) target = $region24
      $region23: #{net_forward.3} parent=5 // pred_region
        // Predicated region
        $region25: #{net_forward.3} parent=23 // pred_check
          %p128 = pneg %p29
        $region26: #{net_forward.3} parent=23 // pred_check_branch
          %130 = sbr.rel (%p128) target = $region28
        $region27: #{net_forward.3} parent=23 // pred_region
          %s131 = sand.u32 %s19, 1
          %s132 = sand.u32 %s19, 1
          %s133 = smul.addr %s132, 640
          %s134 = scalar_lea.vmem [#allocation2], %s133
          %s135 = smul.u32 2, %s9
          %s136 = smul.addr %s135, 8
          %s137 = scalar_lea.vmem %s0, %s136
          // Predicated region
          $region29: #{net_forward.3} parent=27 // pred_check
            _
          $region30: #{net_forward.3} parent=27 // pred_check_branch
            %139 = sbr.rel (0) target = $region32
          $region31: #{net_forward.3} parent=27 // pred_region
            // Predicated region
            $region33: #{net_forward.3} parent=31 // pred_check
              _
            $region34: #{net_forward.3} parent=31 // pred_check_branch
              %141 = sbr.rel (0) target = $region36
            $region35: #{net_forward.3} parent=31 // pred_region
              loop: start=0, step=1, limit=1
              $region37: #{net_forward.3} parent=35 // loop_pre_header
                _
              $region38: #{net_forward.3} parent=35 // loop_header
                %s143 = sphi 0, %s147
                %p144 = scmp.ge.s32.totalorder %s143, 1
                %s148 = sphi %s137, %s137
                %s149 = sphi %s134, %s134
              $region39: #{net_forward.3} parent=35 // loop_header_branch
                %146 = sbr.rel (%p144) target = $region43
              $region40: #{net_forward.3} parent=35 // loop_body
                %v150 = vld [vmem:[%s148] sm:$0xff]
                %151 = vst [vmem:[%s149] sm:$0xff] %v150
                %v152 = vld [vmem:[%s148 + $0x8] sm:$0xff]
                %153 = vst [vmem:[%s149 + $0x8] sm:$0xff] %v152
                %v154 = vld [vmem:[%s148 + $0x20] sm:$0xff]
                %155 = vst [vmem:[%s149 + $0x10] sm:$0xff] %v154
                %v156 = vld [vmem:[%s148 + $0x28] sm:$0xff]
                %157 = vst [vmem:[%s149 + $0x18] sm:$0xff] %v156
                %v158 = vld [vmem:[%s148 + $0x40] sm:$0xff]
                %159 = vst [vmem:[%s149 + $0x20] sm:$0xff] %v158
                %v160 = vld [vmem:[%s148 + $0x48] sm:$0xff]
                %161 = vst [vmem:[%s149 + $0x28] sm:$0xff] %v160
                %v162 = vld [vmem:[%s148 + $0x60] sm:$0xff]
                %163 = vst [vmem:[%s149 + $0x30] sm:$0xff] %v162
                %v164 = vld [vmem:[%s148 + $0x68] sm:$0xff]
                %165 = vst [vmem:[%s149 + $0x38] sm:$0xff] %v164
                %v166 = vld [vmem:[%s148 + $0x80] sm:$0xff]
                %167 = vst [vmem:[%s149 + $0x40] sm:$0xff] %v166
                %v168 = vld [vmem:[%s148 + $0x88] sm:$0xff]
                %169 = vst [vmem:[%s149 + $0x48] sm:$0xff] %v168
                %v170 = vld [vmem:[%s148 + $0xa0] sm:$0xff]
                %171 = vst [vmem:[%s149 + $0x50] sm:$0xff] %v170
                %v172 = vld [vmem:[%s148 + $0xa8] sm:$0xff]
                %173 = vst [vmem:[%s149 + $0x58] sm:$0xff] %v172
                %v174 = vld [vmem:[%s148 + $0xc0] sm:$0xff]
                %175 = vst [vmem:[%s149 + $0x60] sm:$0xff] %v174
                %v176 = vld [vmem:[%s148 + $0xc8] sm:$0xff]
                %177 = vst [vmem:[%s149 + $0x68] sm:$0xff] %v176
                %v178 = vld [vmem:[%s148 + $0xe0] sm:$0xff]
                %179 = vst [vmem:[%s149 + $0x70] sm:$0xff] %v178
                %v180 = vld [vmem:[%s148 + $0xe8] sm:$0xff]
                %181 = vst [vmem:[%s149 + $0x78] sm:$0xff] %v180
                %v182 = vld [vmem:[%s148 + $0x100] sm:$0xff]
                %183 = vst [vmem:[%s149 + $0x80] sm:$0xff] %v182
                %v184 = vld [vmem:[%s148 + $0x108] sm:$0xff]
                %185 = vst [vmem:[%s149 + $0x88] sm:$0xff] %v184
                %v186 = vld [vmem:[%s148 + $0x120] sm:$0xff]
                %187 = vst [vmem:[%s149 + $0x90] sm:$0xff] %v186
                %v188 = vld [vmem:[%s148 + $0x128] sm:$0xff]
                %189 = vst [vmem:[%s149 + $0x98] sm:$0xff] %v188
                %v190 = vld [vmem:[%s148 + $0x140] sm:$0xff]
                %191 = vst [vmem:[%s149 + $0xa0] sm:$0xff] %v190
                %v192 = vld [vmem:[%s148 + $0x148] sm:$0xff]
                %193 = vst [vmem:[%s149 + $0xa8] sm:$0xff] %v192
                %v194 = vld [vmem:[%s148 + $0x160] sm:$0xff]
                %195 = vst [vmem:[%s149 + $0xb0] sm:$0xff] %v194
                %v196 = vld [vmem:[%s148 + $0x168] sm:$0xff]
                %197 = vst [vmem:[%s149 + $0xb8] sm:$0xff] %v196
                %v198 = vld [vmem:[%s148 + $0x180] sm:$0xff]
                %199 = vst [vmem:[%s149 + $0xc0] sm:$0xff] %v198
                %v200 = vld [vmem:[%s148 + $0x188] sm:$0xff]
                %201 = vst [vmem:[%s149 + $0xc8] sm:$0xff] %v200
                %v202 = vld [vmem:[%s148 + $0x1a0] sm:$0xff]
                %203 = vst [vmem:[%s149 + $0xd0] sm:$0xff] %v202
                %v204 = vld [vmem:[%s148 + $0x1a8] sm:$0xff]
                %205 = vst [vmem:[%s149 + $0xd8] sm:$0xff] %v204
                %v206 = vld [vmem:[%s148 + $0x1c0] sm:$0xff]
                %207 = vst [vmem:[%s149 + $0xe0] sm:$0xff] %v206
                %v208 = vld [vmem:[%s148 + $0x1c8] sm:$0xff]
                %209 = vst [vmem:[%s149 + $0xe8] sm:$0xff] %v208
                %v210 = vld [vmem:[%s148 + $0x1e0] sm:$0xff]
                %211 = vst [vmem:[%s149 + $0xf0] sm:$0xff] %v210
                %v212 = vld [vmem:[%s148 + $0x1e8] sm:$0xff]
                %213 = vst [vmem:[%s149 + $0xf8] sm:$0xff] %v212
                %v214 = vld [vmem:[%s148 + $0x200] sm:$0xff]
                %215 = vst [vmem:[%s149 + $0x100] sm:$0xff] %v214
                %v216 = vld [vmem:[%s148 + $0x208] sm:$0xff]
                %217 = vst [vmem:[%s149 + $0x108] sm:$0xff] %v216
                %v218 = vld [vmem:[%s148 + $0x220] sm:$0xff]
                %219 = vst [vmem:[%s149 + $0x110] sm:$0xff] %v218
                %v220 = vld [vmem:[%s148 + $0x228] sm:$0xff]
                %221 = vst [vmem:[%s149 + $0x118] sm:$0xff] %v220
                %v222 = vld [vmem:[%s148 + $0x240] sm:$0xff]
                %223 = vst [vmem:[%s149 + $0x120] sm:$0xff] %v222
                %v224 = vld [vmem:[%s148 + $0x248] sm:$0xff]
                %225 = vst [vmem:[%s149 + $0x128] sm:$0xff] %v224
                %v226 = vld [vmem:[%s148 + $0x260] sm:$0xff]
                %227 = vst [vmem:[%s149 + $0x130] sm:$0xff] %v226
                %v228 = vld [vmem:[%s148 + $0x268] sm:$0xff]
                %229 = vst [vmem:[%s149 + $0x138] sm:$0xff] %v228
                %v230 = vld [vmem:[%s148 + $0x280] sm:$0xff]
                %231 = vst [vmem:[%s149 + $0x140] sm:$0xff] %v230
                %v232 = vld [vmem:[%s148 + $0x288] sm:$0xff]
                %233 = vst [vmem:[%s149 + $0x148] sm:$0xff] %v232
                %v234 = vld [vmem:[%s148 + $0x2a0] sm:$0xff]
                %235 = vst [vmem:[%s149 + $0x150] sm:$0xff] %v234
                %v236 = vld [vmem:[%s148 + $0x2a8] sm:$0xff]
                %237 = vst [vmem:[%s149 + $0x158] sm:$0xff] %v236
                %v238 = vld [vmem:[%s148 + $0x2c0] sm:$0xff]
                %239 = vst [vmem:[%s149 + $0x160] sm:$0xff] %v238
                %v240 = vld [vmem:[%s148 + $0x2c8] sm:$0xff]
                %241 = vst [vmem:[%s149 + $0x168] sm:$0xff] %v240
                %v242 = vld [vmem:[%s148 + $0x2e0] sm:$0xff]
                %243 = vst [vmem:[%s149 + $0x170] sm:$0xff] %v242
                %v244 = vld [vmem:[%s148 + $0x2e8] sm:$0xff]
                %245 = vst [vmem:[%s149 + $0x178] sm:$0xff] %v244
                %v246 = vld [vmem:[%s148 + $0x300] sm:$0xff]
                %247 = vst [vmem:[%s149 + $0x180] sm:$0xff] %v246
                %v248 = vld [vmem:[%s148 + $0x308] sm:$0xff]
                %249 = vst [vmem:[%s149 + $0x188] sm:$0xff] %v248
                %v250 = vld [vmem:[%s148 + $0x320] sm:$0xff]
                %251 = vst [vmem:[%s149 + $0x190] sm:$0xff] %v250
                %v252 = vld [vmem:[%s148 + $0x328] sm:$0xff]
                %253 = vst [vmem:[%s149 + $0x198] sm:$0xff] %v252
                %v254 = vld [vmem:[%s148 + $0x340] sm:$0xff]
                %255 = vst [vmem:[%s149 + $0x1a0] sm:$0xff] %v254
                %v256 = vld [vmem:[%s148 + $0x348] sm:$0xff]
                %257 = vst [vmem:[%s149 + $0x1a8] sm:$0xff] %v256
                %v258 = vld [vmem:[%s148 + $0x360] sm:$0xff]
                %259 = vst [vmem:[%s149 + $0x1b0] sm:$0xff] %v258
                %v260 = vld [vmem:[%s148 + $0x368] sm:$0xff]
                %261 = vst [vmem:[%s149 + $0x1b8] sm:$0xff] %v260
                %v262 = vld [vmem:[%s148 + $0x380] sm:$0xff]
                %263 = vst [vmem:[%s149 + $0x1c0] sm:$0xff] %v262
                %v264 = vld [vmem:[%s148 + $0x388] sm:$0xff]
                %265 = vst [vmem:[%s149 + $0x1c8] sm:$0xff] %v264
                %v266 = vld [vmem:[%s148 + $0x3a0] sm:$0xff]
                %267 = vst [vmem:[%s149 + $0x1d0] sm:$0xff] %v266
                %v268 = vld [vmem:[%s148 + $0x3a8] sm:$0xff]
                %269 = vst [vmem:[%s149 + $0x1d8] sm:$0xff] %v268
                %v270 = vld [vmem:[%s148 + $0x3c0] sm:$0xff]
                %271 = vst [vmem:[%s149 + $0x1e0] sm:$0xff] %v270
                %v272 = vld [vmem:[%s148 + $0x3c8] sm:$0xff]
                %273 = vst [vmem:[%s149 + $0x1e8] sm:$0xff] %v272
                %v274 = vld [vmem:[%s148 + $0x3e0] sm:$0xff]
                %275 = vst [vmem:[%s149 + $0x1f0] sm:$0xff] %v274
                %v276 = vld [vmem:[%s148 + $0x3e8] sm:$0xff]
                %277 = vst [vmem:[%s149 + $0x1f8] sm:$0xff] %v276
                %v278 = vld [vmem:[%s148 + $0x400] sm:$0xff]
                %279 = vst [vmem:[%s149 + $0x200] sm:$0xff] %v278
                %v280 = vld [vmem:[%s148 + $0x408] sm:$0xff]
                %281 = vst [vmem:[%s149 + $0x208] sm:$0xff] %v280
                %v282 = vld [vmem:[%s148 + $0x420] sm:$0xff]
                %283 = vst [vmem:[%s149 + $0x210] sm:$0xff] %v282
                %v284 = vld [vmem:[%s148 + $0x428] sm:$0xff]
                %285 = vst [vmem:[%s149 + $0x218] sm:$0xff] %v284
                %v286 = vld [vmem:[%s148 + $0x440] sm:$0xff]
                %287 = vst [vmem:[%s149 + $0x220] sm:$0xff] %v286
                %v288 = vld [vmem:[%s148 + $0x448] sm:$0xff]
                %289 = vst [vmem:[%s149 + $0x228] sm:$0xff] %v288
                %v290 = vld [vmem:[%s148 + $0x460] sm:$0xff]
                %291 = vst [vmem:[%s149 + $0x230] sm:$0xff] %v290
                %v292 = vld [vmem:[%s148 + $0x468] sm:$0xff]
                %293 = vst [vmem:[%s149 + $0x238] sm:$0xff] %v292
                %v294 = vld [vmem:[%s148 + $0x480] sm:$0xff]
                %295 = vst [vmem:[%s149 + $0x240] sm:$0xff] %v294
                %v296 = vld [vmem:[%s148 + $0x488] sm:$0xff]
                %297 = vst [vmem:[%s149 + $0x248] sm:$0xff] %v296
                %v298 = vld [vmem:[%s148 + $0x4a0] sm:$0xff]
                %299 = vst [vmem:[%s149 + $0x250] sm:$0xff] %v298
                %v300 = vld [vmem:[%s148 + $0x4a8] sm:$0xff]
                %301 = vst [vmem:[%s149 + $0x258] sm:$0xff] %v300
                %v302 = vld [vmem:[%s148 + $0x4c0] sm:$0xff]
                %303 = vst [vmem:[%s149 + $0x260] sm:$0xff] %v302
                %v304 = vld [vmem:[%s148 + $0x4c8] sm:$0xff]
                %305 = vst [vmem:[%s149 + $0x268] sm:$0xff] %v304
                %v306 = vld [vmem:[%s148 + $0x4e0] sm:$0xff]
                %307 = vst [vmem:[%s149 + $0x270] sm:$0xff] %v306
                %v308 = vld [vmem:[%s148 + $0x4e8] sm:$0xff]
                %309 = vst [vmem:[%s149 + $0x278] sm:$0xff] %v308
              $region41: #{net_forward.3} parent=35 // loop_footer
                %s147 = sadd.s32 1, %s143
              $region42: #{net_forward.3} parent=35 // loop_footer_branch
                %142 = sbr.rel target = $region38
              $region43: #{net_forward.3} parent=35 // loop_exit
                _
            $region36: #{net_forward.3} parent=31 // pred_fallthru
              _
            // Predicated region
            $region44: #{net_forward.3} parent=31 // pred_check
              _
            $region45: #{net_forward.3} parent=31 // pred_check_branch
              %311 = sbr.rel target = $region47
            $region46: #{net_forward.3} parent=31 // pred_region
              _
            $region47: #{net_forward.3} parent=31 // pred_fallthru
              _
          $region32: #{net_forward.3} parent=27 // pred_fallthru
            _
          %312 = vnop
        $region28: #{net_forward.3} parent=23 // pred_fallthru
          _
      $region24: #{net_forward.3} parent=5 // pred_fallthru
        _
      %p313 = scmp.le.s32.totalorder 1, %s9
      %p314 = scmp.lt.s32.totalorder %s9, 3
      %p315 = pnand %p313, %p314
      %p316 = pneg %p315
      // Predicated region
      $region48: #{net_forward.3} parent=5 // pred_check
        _
      $region49: #{net_forward.3} parent=5 // pred_check_branch
        %318 = sbr.rel (%p315) target = $region51
      $region50: #{net_forward.3} parent=5 // pred_region
        %s319 = ssub.s32 %s9, 1
        %s320 = sand.u32 %s22, 1
        %s321 = sand.u32 %s22, 1
        %s322 = smul.addr %s321, 640
        %s323 = scalar_lea.vmem [#allocation2], %s322
        // Predicated region
        $region52: #{net_forward.3} parent=50 // pred_check
          %p324 = pneg %p35
        $region53: #{net_forward.3} parent=50 // pred_check_branch
          %326 = sbr.rel (%p324) target = $region55
        $region54: #{net_forward.3} parent=50 // pred_region
          _
        $region55: #{net_forward.3} parent=50 // pred_fallthru
          _
        %s327 = sand.u32 %s22, 1
        %s328 = sand.u32 %s22, 1
        %s329 = smul.addr %s328, 640
        %s330 = scalar_lea.vmem [#allocation2], %s329
        %p331 = pneg %p35
        %p332 = pneg %p32
        %p333 = pneg %p56
        %p334 = pneg %p53
        %p335 = pneg %p77
        %p336 = pneg %p74
        %p337 = pneg %p103
        %p338 = pneg %p100
        %s339 = smul.u32 2, %s14
        %p340 = scmp.lt.s32.totalorder %s339, 3
        %s341 = scalar_select %p340, %s339, 3
        %s342 = smul.addr %s341, 8
        %s343 = scalar_lea.vmem %s3, %s342
        %s344 = smul.u32 2, %s14
        %s345 = smul.u32 2, %s14
        %p346 = scmp.lt.s32.totalorder %s345, 3
        %s347 = scalar_select %p346, %s345, 3
        %s348 = smul.addr %s347, 8
        %s349 = scalar_lea.vmem %s3, %s348
        %s350 = smul.u32 2, %s14
        %v351 = vld [vmem:[%s1] sm:$0x3f]
        %v352 = vld [vmem:[%s2] sm:$0x3f]
        %v353 = vld [vmem:[%s323] sm:$0xff]
        %v354 = vld [vmem:[%s323 + $0x8] sm:$0xff]
        %v355 = vld [vmem:[%s323 + $0x10] sm:$0xff]
        %v356 = vld [vmem:[%s323 + $0x18] sm:$0xff]
        %v357 = vld [vmem:[%s323 + $0x20] sm:$0xff]
        %v358 = vld [vmem:[%s323 + $0x28] sm:$0xff]
        %v359 = vld [vmem:[%s323 + $0x30] sm:$0xff]
        %v360 = vld [vmem:[%s323 + $0x38] sm:$0xff]
        %v361 = vld [vmem:[%s323 + $0x40] sm:$0xff]
        %v362 = vld [vmem:[%s323 + $0x48] sm:$0xff]
        %v363 = vld [vmem:[%s323 + $0x50] sm:$0xff]
        %v364 = vld [vmem:[%s323 + $0x58] sm:$0xff]
        %v365 = vld [vmem:[%s323 + $0x60] sm:$0xff]
        %v366 = vld [vmem:[%s323 + $0x68] sm:$0xff]
        %v367 = vld [vmem:[%s323 + $0x70] sm:$0xff]
        %v368 = vld [vmem:[%s323 + $0x78] sm:$0xff]
        %v369 = vld [vmem:[%s323 + $0x80] sm:$0xff]
        %v370 = vld [vmem:[%s323 + $0x88] sm:$0xff]
        %v371 = vld [vmem:[%s323 + $0x90] sm:$0xff]
        %v372 = vld [vmem:[%s323 + $0x98] sm:$0xff]
        %374 = vset.pattern.permute.xlu0 0
        %375 = vperm.xlu0 %374, %v352
        %v376 = vpop.permute.xlu0 %375
        %vm378 = vcmask 654336
        %v380 = vsel %vm378, %v351, 0
        %382 = vmatpush.msra.mxu0 0.0
        %383 = vmatpush.msra.mxu0 0.0
        %384 = vmatpush.msra.mxu0 0.0
        %385 = vmatpush.msra.mxu0 0.0
        %386 = vmatpush.msra.mxu0 0.0
        %387 = vmatpush.msra.mxu0 0.0
        %388 = vmatpush.msra.mxu0 %v371
        %389 = vmatpush.msra.mxu0 %v369
        %390 = vmatpush.msra.mxu0 %v367
        %391 = vmatpush.msra.mxu0 %v365
        %392 = vmatpush.msra.mxu0 %v363
        %393 = vmatpush.msra.mxu0 %v361
        %394 = vmatpush.msra.mxu0 %v359
        %395 = vmatpush.msra.mxu0 %v357
        %396 = vmatpush.msra.mxu0 %v355
        %397 = vmatpush.msra.mxu0 %v353
        %398 = vmatmul.f32.gmra.mxu0 %v380
        %v399 = vpop.f32.mrf.mxu0
        %v400 = vadd.f32 %v376, %v399
        %401 = vdwg.mxu0
        %402 = vmatpush.msra.mxu0 0.0
        %403 = vmatpush.msra.mxu0 0.0
        %404 = vmatpush.msra.mxu0 0.0
        %405 = vmatpush.msra.mxu0 0.0
        %406 = vmatpush.msra.mxu0 0.0
        %407 = vmatpush.msra.mxu0 0.0
        %408 = vmatpush.msra.mxu0 %v372
        %409 = vmatpush.msra.mxu0 %v370
        %410 = vmatpush.msra.mxu0 %v368
        %411 = vmatpush.msra.mxu0 %v366
        %412 = vmatpush.msra.mxu0 %v364
        %413 = vmatpush.msra.mxu0 %v362
        %414 = vmatpush.msra.mxu0 %v360
        %415 = vmatpush.msra.mxu0 %v358
        %416 = vmatpush.msra.mxu0 %v356
        %417 = vmatpush.msra.mxu0 %v354
        %418 = vmatmul.f32.gmra.mxu0 %v380
        %v419 = vpop.f32.mrf.mxu0
        %v420 = vadd.f32 %v376, %v419
        %421 = vdwg.mxu0
        %v422 = vmax.f32 %v400, 0.0
        %v423 = vmax.f32 %v420, 0.0
        %s424 = scalar_lea.vmem %s323, 160 [#allocation2]
        %v425 = vld [vmem:[%s424] sm:$0xff]
        %v426 = vld [vmem:[%s424 + $0x8] sm:$0xff]
        %v427 = vld [vmem:[%s424 + $0x10] sm:$0xff]
        %v428 = vld [vmem:[%s424 + $0x18] sm:$0xff]
        %v429 = vld [vmem:[%s424 + $0x20] sm:$0xff]
        %v430 = vld [vmem:[%s424 + $0x28] sm:$0xff]
        %v431 = vld [vmem:[%s424 + $0x30] sm:$0xff]
        %v432 = vld [vmem:[%s424 + $0x38] sm:$0xff]
        %v433 = vld [vmem:[%s424 + $0x40] sm:$0xff]
        %v434 = vld [vmem:[%s424 + $0x48] sm:$0xff]
        %v435 = vld [vmem:[%s424 + $0x50] sm:$0xff]
        %v436 = vld [vmem:[%s424 + $0x58] sm:$0xff]
        %v437 = vld [vmem:[%s424 + $0x60] sm:$0xff]
        %v438 = vld [vmem:[%s424 + $0x68] sm:$0xff]
        %v439 = vld [vmem:[%s424 + $0x70] sm:$0xff]
        %v440 = vld [vmem:[%s424 + $0x78] sm:$0xff]
        %v441 = vld [vmem:[%s424 + $0x80] sm:$0xff]
        %v442 = vld [vmem:[%s424 + $0x88] sm:$0xff]
        %v443 = vld [vmem:[%s424 + $0x90] sm:$0xff]
        %v444 = vld [vmem:[%s424 + $0x98] sm:$0xff]
        %445 = vmatpush.msra.mxu0 0.0
        %446 = vmatpush.msra.mxu0 0.0
        %447 = vmatpush.msra.mxu0 0.0
        %448 = vmatpush.msra.mxu0 0.0
        %449 = vmatpush.msra.mxu0 0.0
        %450 = vmatpush.msra.mxu0 0.0
        %451 = vmatpush.msra.mxu0 %v443
        %452 = vmatpush.msra.mxu0 %v441
        %453 = vmatpush.msra.mxu0 %v439
        %454 = vmatpush.msra.mxu0 %v437
        %455 = vmatpush.msra.mxu0 %v435
        %456 = vmatpush.msra.mxu0 %v433
        %457 = vmatpush.msra.mxu0 %v431
        %458 = vmatpush.msra.mxu0 %v429
        %459 = vmatpush.msra.mxu0 %v427
        %460 = vmatpush.msra.mxu0 %v425
        %461 = vmatmul.f32.gmra.mxu0 %v380
        %v462 = vpop.f32.mrf.mxu0
        %v463 = vadd.f32 %v376, %v462
        %464 = vdwg.mxu0
        %465 = vmatpush.msra.mxu0 0.0
        %466 = vmatpush.msra.mxu0 0.0
        %467 = vmatpush.msra.mxu0 0.0
        %468 = vmatpush.msra.mxu0 0.0
        %469 = vmatpush.msra.mxu0 0.0
        %470 = vmatpush.msra.mxu0 0.0
        %471 = vmatpush.msra.mxu0 %v444
        %472 = vmatpush.msra.mxu0 %v442
        %473 = vmatpush.msra.mxu0 %v440
        %474 = vmatpush.msra.mxu0 %v438
        %475 = vmatpush.msra.mxu0 %v436
        %476 = vmatpush.msra.mxu0 %v434
        %477 = vmatpush.msra.mxu0 %v432
        %478 = vmatpush.msra.mxu0 %v430
        %479 = vmatpush.msra.mxu0 %v428
        %480 = vmatpush.msra.mxu0 %v426
        %481 = vmatmul.f32.gmra.mxu0 %v380
        %v482 = vpop.f32.mrf.mxu0
        %v483 = vadd.f32 %v376, %v482
        %484 = vdwg.mxu0
        %v485 = vmax.f32 %v463, 0.0
        %v486 = vmax.f32 %v483, 0.0
        %v487 = vmax.f32 %v422, %v485
        %v488 = vmax.f32 %v423, %v486
        %s489 = scalar_lea.vmem %s323, 320 [#allocation2]
        %v490 = vld [vmem:[%s489] sm:$0xff]
        %v491 = vld [vmem:[%s489 + $0x8] sm:$0xff]
        %v492 = vld [vmem:[%s489 + $0x10] sm:$0xff]
        %v493 = vld [vmem:[%s489 + $0x18] sm:$0xff]
        %v494 = vld [vmem:[%s489 + $0x20] sm:$0xff]
        %v495 = vld [vmem:[%s489 + $0x28] sm:$0xff]
        %v496 = vld [vmem:[%s489 + $0x30] sm:$0xff]
        %v497 = vld [vmem:[%s489 + $0x38] sm:$0xff]
        %v498 = vld [vmem:[%s489 + $0x40] sm:$0xff]
        %v499 = vld [vmem:[%s489 + $0x48] sm:$0xff]
        %v500 = vld [vmem:[%s489 + $0x50] sm:$0xff]
        %v501 = vld [vmem:[%s489 + $0x58] sm:$0xff]
        %v502 = vld [vmem:[%s489 + $0x60] sm:$0xff]
        %v503 = vld [vmem:[%s489 + $0x68] sm:$0xff]
        %v504 = vld [vmem:[%s489 + $0x70] sm:$0xff]
        %v505 = vld [vmem:[%s489 + $0x78] sm:$0xff]
        %v506 = vld [vmem:[%s489 + $0x80] sm:$0xff]
        %v507 = vld [vmem:[%s489 + $0x88] sm:$0xff]
        %v508 = vld [vmem:[%s489 + $0x90] sm:$0xff]
        %v509 = vld [vmem:[%s489 + $0x98] sm:$0xff]
        %510 = vmatpush.msra.mxu0 0.0
        %511 = vmatpush.msra.mxu0 0.0
        %512 = vmatpush.msra.mxu0 0.0
        %513 = vmatpush.msra.mxu0 0.0
        %514 = vmatpush.msra.mxu0 0.0
        %515 = vmatpush.msra.mxu0 0.0
        %516 = vmatpush.msra.mxu0 %v508
        %517 = vmatpush.msra.mxu0 %v506
        %518 = vmatpush.msra.mxu0 %v504
        %519 = vmatpush.msra.mxu0 %v502
        %520 = vmatpush.msra.mxu0 %v500
        %521 = vmatpush.msra.mxu0 %v498
        %522 = vmatpush.msra.mxu0 %v496
        %523 = vmatpush.msra.mxu0 %v494
        %524 = vmatpush.msra.mxu0 %v492
        %525 = vmatpush.msra.mxu0 %v490
        %526 = vmatmul.f32.gmra.mxu0 %v380
        %v527 = vpop.f32.mrf.mxu0
        %v528 = vadd.f32 %v376, %v527
        %529 = vdwg.mxu0
        %530 = vmatpush.msra.mxu0 0.0
        %531 = vmatpush.msra.mxu0 0.0
        %532 = vmatpush.msra.mxu0 0.0
        %533 = vmatpush.msra.mxu0 0.0
        %534 = vmatpush.msra.mxu0 0.0
        %535 = vmatpush.msra.mxu0 0.0
        %536 = vmatpush.msra.mxu0 %v509
        %537 = vmatpush.msra.mxu0 %v507
        %538 = vmatpush.msra.mxu0 %v505
        %539 = vmatpush.msra.mxu0 %v503
        %540 = vmatpush.msra.mxu0 %v501
        %541 = vmatpush.msra.mxu0 %v499
        %542 = vmatpush.msra.mxu0 %v497
        %543 = vmatpush.msra.mxu0 %v495
        %544 = vmatpush.msra.mxu0 %v493
        %545 = vmatpush.msra.mxu0 %v491
        %546 = vmatmul.f32.gmra.mxu0 %v380
        %v547 = vpop.f32.mrf.mxu0
        %v548 = vadd.f32 %v376, %v547
        %549 = vdwg.mxu0
        %v550 = vmax.f32 %v528, 0.0
        %v551 = vmax.f32 %v548, 0.0
        %v552 = vmax.f32 %v487, %v550
        %v553 = vmax.f32 %v488, %v551
        %s554 = scalar_lea.vmem %s323, 480 [#allocation2]
        %v555 = vld [vmem:[%s554] sm:$0xff]
        %v556 = vld [vmem:[%s554 + $0x8] sm:$0xff]
        %v557 = vld [vmem:[%s554 + $0x10] sm:$0xff]
        %v558 = vld [vmem:[%s554 + $0x18] sm:$0xff]
        %v559 = vld [vmem:[%s554 + $0x20] sm:$0xff]
        %v560 = vld [vmem:[%s554 + $0x28] sm:$0xff]
        %v561 = vld [vmem:[%s554 + $0x30] sm:$0xff]
        %v562 = vld [vmem:[%s554 + $0x38] sm:$0xff]
        %v563 = vld [vmem:[%s554 + $0x40] sm:$0xff]
        %v564 = vld [vmem:[%s554 + $0x48] sm:$0xff]
        %v565 = vld [vmem:[%s554 + $0x50] sm:$0xff]
        %v566 = vld [vmem:[%s554 + $0x58] sm:$0xff]
        %v567 = vld [vmem:[%s554 + $0x60] sm:$0xff]
        %v568 = vld [vmem:[%s554 + $0x68] sm:$0xff]
        %v569 = vld [vmem:[%s554 + $0x70] sm:$0xff]
        %v570 = vld [vmem:[%s554 + $0x78] sm:$0xff]
        %v571 = vld [vmem:[%s554 + $0x80] sm:$0xff]
        %v572 = vld [vmem:[%s554 + $0x88] sm:$0xff]
        %v573 = vld [vmem:[%s554 + $0x90] sm:$0xff]
        %v574 = vld [vmem:[%s554 + $0x98] sm:$0xff]
        %575 = vmatpush.msra.mxu0 0.0
        %576 = vmatpush.msra.mxu0 0.0
        %577 = vmatpush.msra.mxu0 0.0
        %578 = vmatpush.msra.mxu0 0.0
        %579 = vmatpush.msra.mxu0 0.0
        %580 = vmatpush.msra.mxu0 0.0
        %581 = vmatpush.msra.mxu0 %v573
        %582 = vmatpush.msra.mxu0 %v571
        %583 = vmatpush.msra.mxu0 %v569
        %584 = vmatpush.msra.mxu0 %v567
        %585 = vmatpush.msra.mxu0 %v565
        %586 = vmatpush.msra.mxu0 %v563
        %587 = vmatpush.msra.mxu0 %v561
        %588 = vmatpush.msra.mxu0 %v559
        %589 = vmatpush.msra.mxu0 %v557
        %590 = vmatpush.msra.mxu0 %v555
        %591 = vmatmul.f32.gmra.mxu0 %v380
        %v592 = vpop.f32.mrf.mxu0
        %v593 = vadd.f32 %v376, %v592
        %594 = vdwg.mxu0
        %595 = vmatpush.msra.mxu0 0.0
        %596 = vmatpush.msra.mxu0 0.0
        %597 = vmatpush.msra.mxu0 0.0
        %598 = vmatpush.msra.mxu0 0.0
        %599 = vmatpush.msra.mxu0 0.0
        %600 = vmatpush.msra.mxu0 0.0
        %601 = vmatpush.msra.mxu0 %v574
        %602 = vmatpush.msra.mxu0 %v572
        %603 = vmatpush.msra.mxu0 %v570
        %604 = vmatpush.msra.mxu0 %v568
        %605 = vmatpush.msra.mxu0 %v566
        %606 = vmatpush.msra.mxu0 %v564
        %607 = vmatpush.msra.mxu0 %v562
        %608 = vmatpush.msra.mxu0 %v560
        %609 = vmatpush.msra.mxu0 %v558
        %610 = vmatpush.msra.mxu0 %v556
        %611 = vmatmul.f32.gmra.mxu0 %v380
        %v612 = vpop.f32.mrf.mxu0
        %v613 = vadd.f32 %v376, %v612
        %614 = vdwg.mxu0
        %v615 = vmax.f32 %v593, 0.0
        %v616 = vmax.f32 %v613, 0.0
        %v617 = vmax.f32 %v552, %v615
        %v618 = vmax.f32 %v553, %v616
        %619 = vst [vmem:[%s349] sm:$0x3f] %v617
        %620 = vst [vmem:[%s349 + $0x8] sm:$0x3f] %v618
        %s621 = smul.u32 2, %s14
        %p622 = scmp.lt.s32.totalorder %s621, 3
        %s623 = scalar_select %p622, %s621, 3
        %s624 = smul.addr %s623, 8
        %s625 = scalar_lea.vmem %s3, %s624
        // Predicated region
        $region56: #{net_forward.3} parent=50 // pred_check
          %p626 = pneg %p100
        $region57: #{net_forward.3} parent=50 // pred_check_branch
          %628 = sbr.rel (%p626) target = $region59
        $region58: #{net_forward.3} parent=50 // pred_region
          %s629 = smul.u32 2, %s14
        $region59: #{net_forward.3} parent=50 // pred_fallthru
          _
      $region51: #{net_forward.3} parent=5 // pred_fallthru
        _
      %p630 = scmp.le.s32.totalorder 2, %s9
      // Predicated region
      $region60: #{net_forward.3} parent=5 // pred_check
        %p631 = pneg %p630
      $region61: #{net_forward.3} parent=5 // pred_check_branch
        %633 = sbr.rel (%p631) target = $region63
      $region62: #{net_forward.3} parent=5 // pred_region
        %s634 = ssub.s32 %s9, 2
        // Predicated region
        $region64: #{net_forward.3} parent=62 // pred_check
          %p635 = pneg %p106
        $region65: #{net_forward.3} parent=62 // pred_check_branch
          %637 = sbr.rel (%p635) target = $region67
        $region66: #{net_forward.3} parent=62 // pred_region
          %s638 = smul.u32 2, %s15
          %p639 = scmp.lt.s32.totalorder %s638, 3
          %s640 = scalar_select %p639, %s638, 3
          %s641 = smul.addr %s640, 8
          %s642 = scalar_lea.vmem %s3, %s641
        $region67: #{net_forward.3} parent=62 // pred_fallthru
          _
      $region63: #{net_forward.3} parent=5 // pred_fallthru
        _
    $region6: #{net_forward.3} parent=1 // loop_footer
      %s13 = sadd.s32 1, %s9
    $region7: #{net_forward.3} parent=1 // loop_footer_branch
      %8 = sbr.rel target = $region3
    $region8: #{net_forward.3} parent=1 // loop_exit
      _

// kernel: net_forward.4
$region0: #{net_forward.4}
  #allocation0 [shape = 'u32[]', space=smem, size = 0x4, offset = 0x4, fixed_abs, tag = 'smem constant byte address 0x4 - core index']
  #allocation1 [shape = 'u32[72,128]{1,0:T(1,128)}', space=vmem, size = 0x9000, scoped, tag = 'internal scratch']
  %s0 = inlined_call_operand.vmem [shape: f32[4,152,50], index: 0, kind: input, shape index: {}]
  %s1 = inlined_call_operand.vmem [shape: f32[16,152], index: 1, kind: input, shape index: {}]
  %s2 = inlined_call_operand.vmem [shape: f32[16,1], index: 2, kind: input, shape index: {}]
  %s3 = inlined_call_operand.vmem [shape: f32[16,50], index: 3, kind: output, shape index: {}]
  %s4 = sld [smem:[#allocation0]]
  $region22: #{net_forward.4} parent=0
    _
  %s6 = ssub.s32 1, %s4
  %s7 = scalar_select 0, %s6, %s4
  // Predicated region
  $region2: #{net_forward.4} parent=0 // pred_check
    _
  $region3: #{net_forward.4} parent=0 // pred_check_branch
    %9 = sbr.rel (0) target = $region5
  $region4: #{net_forward.4} parent=0 // pred_region
    _
  $region5: #{net_forward.4} parent=0 // pred_fallthru
    _
  // Predicated region
  $region6: #{net_forward.4} parent=0 // pred_check
    _
  $region7: #{net_forward.4} parent=0 // pred_check_branch
    %11 = sbr.rel (0) target = $region9
  $region8: #{net_forward.4} parent=0 // pred_region
    _
  $region9: #{net_forward.4} parent=0 // pred_fallthru
    _
  // Predicated region
  $region10: #{net_forward.4} parent=0 // pred_check
    _
  $region11: #{net_forward.4} parent=0 // pred_check_branch
    %13 = sbr.rel (0) target = $region13
  $region12: #{net_forward.4} parent=0 // pred_region
    _
  $region13: #{net_forward.4} parent=0 // pred_fallthru
    _
  %v14 = vld [vmem:[%s1] sm:$0xff]
  %v15 = vld [vmem:[%s1 + $0x8] sm:$0xff]
  %v16 = vld [vmem:[%s1 + $0x10] sm:$0xff]
  %v17 = vld [vmem:[%s1 + $0x18] sm:$0xff]
  %v18 = vld [vmem:[%s2] sm:$0xff]
  %v19 = vld [vmem:[%s2 + $0x8] sm:$0xff]
  %v20 = vld [vmem:[%s0] sm:$0xff]
  %v21 = vld [vmem:[%s0 + $0x8] sm:$0xff]
  %v22 = vld [vmem:[%s0 + $0x10] sm:$0xff]
  %v23 = vld [vmem:[%s0 + $0x18] sm:$0xff]
  %v24 = vld [vmem:[%s0 + $0x20] sm:$0xff]
  %v25 = vld [vmem:[%s0 + $0x28] sm:$0xff]
  %v26 = vld [vmem:[%s0 + $0x30] sm:$0xff]
  %v27 = vld [vmem:[%s0 + $0x38] sm:$0xff]
  %v28 = vld [vmem:[%s0 + $0x40] sm:$0xff]
  %v29 = vld [vmem:[%s0 + $0x48] sm:$0xff]
  %v30 = vld [vmem:[%s0 + $0x50] sm:$0xff]
  %v31 = vld [vmem:[%s0 + $0x58] sm:$0xff]
  %v32 = vld [vmem:[%s0 + $0x60] sm:$0xff]
  %v33 = vld [vmem:[%s0 + $0x68] sm:$0xff]
  %v34 = vld [vmem:[%s0 + $0x70] sm:$0xff]
  %v35 = vld [vmem:[%s0 + $0x78] sm:$0xff]
  %v36 = vld [vmem:[%s0 + $0x80] sm:$0xff]
  %v37 = vld [vmem:[%s0 + $0x88] sm:$0xff]
  %v38 = vld [vmem:[%s0 + $0x90] sm:$0xff]
  %40 = vset.pattern.permute.xlu0 0
  %41 = vperm.xlu0 %40, %v18
  %v42 = vpop.permute.xlu0 %41
  %45 = vset.pattern.permute.xlu0 0
  %46 = vperm.xlu0 %45, %v19
  %v47 = vpop.permute.xlu0 %46
  %vm49 = vcmask 195584
  %v51 = vsel %vm49, %v15, 0
  %v54 = vsel %vm49, %v17, 0
  %56 = vmatpush.msra.mxu0 %v35
  %57 = vmatpush.msra.mxu0 %v34
  %58 = vmatpush.msra.mxu0 %v33
  %59 = vmatpush.msra.mxu0 %v32
  %60 = vmatpush.msra.mxu0 %v31
  %61 = vmatpush.msra.mxu0 %v30
  %62 = vmatpush.msra.mxu0 %v29
  %63 = vmatpush.msra.mxu0 %v28
  %64 = vmatpush.msra.mxu0 %v27
  %65 = vmatpush.msra.mxu0 %v26
  %66 = vmatpush.msra.mxu0 %v25
  %67 = vmatpush.msra.mxu0 %v24
  %68 = vmatpush.msra.mxu0 %v23
  %69 = vmatpush.msra.mxu0 %v22
  %70 = vmatpush.msra.mxu0 %v21
  %71 = vmatpush.msra.mxu0 %v20
  %72 = vmatmul.f32.gmra.mxu0 %v14
  %v73 = vpop.f32.mrf.mxu0
  %v74 = vadd.f32 %v42, %v73
  %75 = vmatmul.f32.gmra.mxu0 %v16
  %v76 = vpop.f32.mrf.mxu0
  %v77 = vadd.f32 %v47, %v76
  %78 = vdwg.mxu0
  %79 = vmatpush.msra.mxu0 0.0
  %80 = vmatpush.msra.mxu0 0.0
  %81 = vmatpush.msra.mxu0 0.0
  %82 = vmatpush.msra.mxu0 0.0
  %83 = vmatpush.msra.mxu0 0.0
  %84 = vmatpush.msra.mxu0 0.0
  %85 = vmatpush.msra.mxu0 0.0
  %86 = vmatpush.msra.mxu0 0.0
  %87 = vmatpush.msra.mxu0 0.0
  %88 = vmatpush.msra.mxu0 0.0
  %89 = vmatpush.msra.mxu0 0.0
  %90 = vmatpush.msra.mxu0 0.0
  %91 = vmatpush.msra.mxu0 0.0
  %92 = vmatpush.msra.mxu0 %v38
  %93 = vmatpush.msra.mxu0 %v37
  %94 = vmatpush.msra.mxu0 %v36
  %95 = vmatmul.f32.gmra.mxu0 %v51
  %v96 = vpop.f32.mrf.mxu0
  %v97 = vadd.f32 %v74, %v96
  %98 = vmatmul.f32.gmra.mxu0 %v54
  %v99 = vpop.f32.mrf.mxu0
  %v100 = vadd.f32 %v77, %v99
  %101 = vdwg.mxu0
  %v102 = vmax.f32 %v97, 0.0
  %v103 = vmax.f32 %v100, 0.0
  %s104 = scalar_lea.vmem %s0, 152
  %v105 = vld [vmem:[%s104] sm:$0xff]
  %v106 = vld [vmem:[%s104 + $0x8] sm:$0xff]
  %v107 = vld [vmem:[%s104 + $0x10] sm:$0xff]
  %v108 = vld [vmem:[%s104 + $0x18] sm:$0xff]
  %v109 = vld [vmem:[%s104 + $0x20] sm:$0xff]
  %v110 = vld [vmem:[%s104 + $0x28] sm:$0xff]
  %v111 = vld [vmem:[%s104 + $0x30] sm:$0xff]
  %v112 = vld [vmem:[%s104 + $0x38] sm:$0xff]
  %v113 = vld [vmem:[%s104 + $0x40] sm:$0xff]
  %v114 = vld [vmem:[%s104 + $0x48] sm:$0xff]
  %v115 = vld [vmem:[%s104 + $0x50] sm:$0xff]
  %v116 = vld [vmem:[%s104 + $0x58] sm:$0xff]
  %v117 = vld [vmem:[%s104 + $0x60] sm:$0xff]
  %v118 = vld [vmem:[%s104 + $0x68] sm:$0xff]
  %v119 = vld [vmem:[%s104 + $0x70] sm:$0xff]
  %v120 = vld [vmem:[%s104 + $0x78] sm:$0xff]
  %v121 = vld [vmem:[%s104 + $0x80] sm:$0xff]
  %v122 = vld [vmem:[%s104 + $0x88] sm:$0xff]
  %v123 = vld [vmem:[%s104 + $0x90] sm:$0xff]
  %124 = vmatpush.msra.mxu0 %v120
  %125 = vmatpush.msra.mxu0 %v119
  %126 = vmatpush.msra.mxu0 %v118
  %127 = vmatpush.msra.mxu0 %v117
  %128 = vmatpush.msra.mxu0 %v116
  %129 = vmatpush.msra.mxu0 %v115
  %130 = vmatpush.msra.mxu0 %v114
  %131 = vmatpush.msra.mxu0 %v113
  %132 = vmatpush.msra.mxu0 %v112
  %133 = vmatpush.msra.mxu0 %v111
  %134 = vmatpush.msra.mxu0 %v110
  %135 = vmatpush.msra.mxu0 %v109
  %136 = vmatpush.msra.mxu0 %v108
  %137 = vmatpush.msra.mxu0 %v107
  %138 = vmatpush.msra.mxu0 %v106
  %139 = vmatpush.msra.mxu0 %v105
  %140 = vmatmul.f32.gmra.mxu0 %v14
  %v141 = vpop.f32.mrf.mxu0
  %v142 = vadd.f32 %v42, %v141
  %143 = vmatmul.f32.gmra.mxu0 %v16
  %v144 = vpop.f32.mrf.mxu0
  %v145 = vadd.f32 %v47, %v144
  %146 = vdwg.mxu0
  %147 = vmatpush.msra.mxu0 0.0
  %148 = vmatpush.msra.mxu0 0.0
  %149 = vmatpush.msra.mxu0 0.0
  %150 = vmatpush.msra.mxu0 0.0
  %151 = vmatpush.msra.mxu0 0.0
  %152 = vmatpush.msra.mxu0 0.0
  %153 = vmatpush.msra.mxu0 0.0
  %154 = vmatpush.msra.mxu0 0.0
  %155 = vmatpush.msra.mxu0 0.0
  %156 = vmatpush.msra.mxu0 0.0
  %157 = vmatpush.msra.mxu0 0.0
  %158 = vmatpush.msra.mxu0 0.0
  %159 = vmatpush.msra.mxu0 0.0
  %160 = vmatpush.msra.mxu0 %v123
  %161 = vmatpush.msra.mxu0 %v122
  %162 = vmatpush.msra.mxu0 %v121
  %163 = vmatmul.f32.gmra.mxu0 %v51
  %v164 = vpop.f32.mrf.mxu0
  %v165 = vadd.f32 %v142, %v164
  %166 = vmatmul.f32.gmra.mxu0 %v54
  %v167 = vpop.f32.mrf.mxu0
  %v168 = vadd.f32 %v145, %v167
  %169 = vdwg.mxu0
  %v170 = vmax.f32 %v165, 0.0
  %v171 = vmax.f32 %v168, 0.0
  %v172 = vmax.f32 %v102, %v170
  %v173 = vmax.f32 %v103, %v171
  %s174 = scalar_lea.vmem %s0, 304
  %v175 = vld [vmem:[%s174] sm:$0xff]
  %v176 = vld [vmem:[%s174 + $0x8] sm:$0xff]
  %v177 = vld [vmem:[%s174 + $0x10] sm:$0xff]
  %v178 = vld [vmem:[%s174 + $0x18] sm:$0xff]
  %v179 = vld [vmem:[%s174 + $0x20] sm:$0xff]
  %v180 = vld [vmem:[%s174 + $0x28] sm:$0xff]
  %v181 = vld [vmem:[%s174 + $0x30] sm:$0xff]
  %v182 = vld [vmem:[%s174 + $0x38] sm:$0xff]
  %v183 = vld [vmem:[%s174 + $0x40] sm:$0xff]
  %v184 = vld [vmem:[%s174 + $0x48] sm:$0xff]
  %v185 = vld [vmem:[%s174 + $0x50] sm:$0xff]
  %v186 = vld [vmem:[%s174 + $0x58] sm:$0xff]
  %v187 = vld [vmem:[%s174 + $0x60] sm:$0xff]
  %v188 = vld [vmem:[%s174 + $0x68] sm:$0xff]
  %v189 = vld [vmem:[%s174 + $0x70] sm:$0xff]
  %v190 = vld [vmem:[%s174 + $0x78] sm:$0xff]
  %v191 = vld [vmem:[%s174 + $0x80] sm:$0xff]
  %v192 = vld [vmem:[%s174 + $0x88] sm:$0xff]
  %v193 = vld [vmem:[%s174 + $0x90] sm:$0xff]
  %194 = vmatpush.msra.mxu0 %v190
  %195 = vmatpush.msra.mxu0 %v189
  %196 = vmatpush.msra.mxu0 %v188
  %197 = vmatpush.msra.mxu0 %v187
  %198 = vmatpush.msra.mxu0 %v186
  %199 = vmatpush.msra.mxu0 %v185
  %200 = vmatpush.msra.mxu0 %v184
  %201 = vmatpush.msra.mxu0 %v183
  %202 = vmatpush.msra.mxu0 %v182
  %203 = vmatpush.msra.mxu0 %v181
  %204 = vmatpush.msra.mxu0 %v180
  %205 = vmatpush.msra.mxu0 %v179
  %206 = vmatpush.msra.mxu0 %v178
  %207 = vmatpush.msra.mxu0 %v177
  %208 = vmatpush.msra.mxu0 %v176
  %209 = vmatpush.msra.mxu0 %v175
  %210 = vmatmul.f32.gmra.mxu0 %v14
  %v211 = vpop.f32.mrf.mxu0
  %v212 = vadd.f32 %v42, %v211
  %213 = vmatmul.f32.gmra.mxu0 %v16
  %v214 = vpop.f32.mrf.mxu0
  %v215 = vadd.f32 %v47, %v214
  %216 = vdwg.mxu0
  %217 = vmatpush.msra.mxu0 0.0
  %218 = vmatpush.msra.mxu0 0.0
  %219 = vmatpush.msra.mxu0 0.0
  %220 = vmatpush.msra.mxu0 0.0
  %221 = vmatpush.msra.mxu0 0.0
  %222 = vmatpush.msra.mxu0 0.0
  %223 = vmatpush.msra.mxu0 0.0
  %224 = vmatpush.msra.mxu0 0.0
  %225 = vmatpush.msra.mxu0 0.0
  %226 = vmatpush.msra.mxu0 0.0
  %227 = vmatpush.msra.mxu0 0.0
  %228 = vmatpush.msra.mxu0 0.0
  %229 = vmatpush.msra.mxu0 0.0
  %230 = vmatpush.msra.mxu0 %v193
  %231 = vmatpush.msra.mxu0 %v192
  %232 = vmatpush.msra.mxu0 %v191
  %233 = vmatmul.f32.gmra.mxu0 %v51
  %v234 = vpop.f32.mrf.mxu0
  %v235 = vadd.f32 %v212, %v234
  %236 = vmatmul.f32.gmra.mxu0 %v54
  %v237 = vpop.f32.mrf.mxu0
  %v238 = vadd.f32 %v215, %v237
  %239 = vdwg.mxu0
  %v240 = vmax.f32 %v235, 0.0
  %v241 = vmax.f32 %v238, 0.0
  %v242 = vmax.f32 %v172, %v240
  %v243 = vmax.f32 %v173, %v241
  %s244 = scalar_lea.vmem %s0, 456
  %v245 = vld [vmem:[%s244] sm:$0xff]
  %v246 = vld [vmem:[%s244 + $0x8] sm:$0xff]
  %v247 = vld [vmem:[%s244 + $0x10] sm:$0xff]
  %v248 = vld [vmem:[%s244 + $0x18] sm:$0xff]
  %v249 = vld [vmem:[%s244 + $0x20] sm:$0xff]
  %v250 = vld [vmem:[%s244 + $0x28] sm:$0xff]
  %v251 = vld [vmem:[%s244 + $0x30] sm:$0xff]
  %v252 = vld [vmem:[%s244 + $0x38] sm:$0xff]
  %v253 = vld [vmem:[%s244 + $0x40] sm:$0xff]
  %v254 = vld [vmem:[%s244 + $0x48] sm:$0xff]
  %v255 = vld [vmem:[%s244 + $0x50] sm:$0xff]
  %v256 = vld [vmem:[%s244 + $0x58] sm:$0xff]
  %v257 = vld [vmem:[%s244 + $0x60] sm:$0xff]
  %v258 = vld [vmem:[%s244 + $0x68] sm:$0xff]
  %v259 = vld [vmem:[%s244 + $0x70] sm:$0xff]
  %v260 = vld [vmem:[%s244 + $0x78] sm:$0xff]
  %v261 = vld [vmem:[%s244 + $0x80] sm:$0xff]
  %v262 = vld [vmem:[%s244 + $0x88] sm:$0xff]
  %v263 = vld [vmem:[%s244 + $0x90] sm:$0xff]
  %264 = vmatpush.msra.mxu0 %v260
  %265 = vmatpush.msra.mxu0 %v259
  %266 = vmatpush.msra.mxu0 %v258
  %267 = vmatpush.msra.mxu0 %v257
  %268 = vmatpush.msra.mxu0 %v256
  %269 = vmatpush.msra.mxu0 %v255
  %270 = vmatpush.msra.mxu0 %v254
  %271 = vmatpush.msra.mxu0 %v253
  %272 = vmatpush.msra.mxu0 %v252
  %273 = vmatpush.msra.mxu0 %v251
  %274 = vmatpush.msra.mxu0 %v250
  %275 = vmatpush.msra.mxu0 %v249
  %276 = vmatpush.msra.mxu0 %v248
  %277 = vmatpush.msra.mxu0 %v247
  %278 = vmatpush.msra.mxu0 %v246
  %279 = vmatpush.msra.mxu0 %v245
  %280 = vmatmul.f32.gmra.mxu0 %v14
  %v281 = vpop.f32.mrf.mxu0
  %v282 = vadd.f32 %v42, %v281
  %283 = vmatmul.f32.gmra.mxu0 %v16
  %v284 = vpop.f32.mrf.mxu0
  %v285 = vadd.f32 %v47, %v284
  %286 = vdwg.mxu0
  %287 = vmatpush.msra.mxu0 0.0
  %288 = vmatpush.msra.mxu0 0.0
  %289 = vmatpush.msra.mxu0 0.0
  %290 = vmatpush.msra.mxu0 0.0
  %291 = vmatpush.msra.mxu0 0.0
  %292 = vmatpush.msra.mxu0 0.0
  %293 = vmatpush.msra.mxu0 0.0
  %294 = vmatpush.msra.mxu0 0.0
  %295 = vmatpush.msra.mxu0 0.0
  %296 = vmatpush.msra.mxu0 0.0
  %297 = vmatpush.msra.mxu0 0.0
  %298 = vmatpush.msra.mxu0 0.0
  %299 = vmatpush.msra.mxu0 0.0
  %300 = vmatpush.msra.mxu0 %v263
  %301 = vmatpush.msra.mxu0 %v262
  %302 = vmatpush.msra.mxu0 %v261
  %303 = vmatmul.f32.gmra.mxu0 %v51
  %v304 = vpop.f32.mrf.mxu0
  %v305 = vadd.f32 %v282, %v304
  %306 = vmatmul.f32.gmra.mxu0 %v54
  %v307 = vpop.f32.mrf.mxu0
  %v308 = vadd.f32 %v285, %v307
  %309 = vdwg.mxu0
  %v310 = vmax.f32 %v305, 0.0
  %v311 = vmax.f32 %v308, 0.0
  %v312 = vmax.f32 %v242, %v310
  %v313 = vmax.f32 %v243, %v311
  %vm314 = vcmask 408576
  %315 = vst.msk [vmem:[%s3] sm:$0xff] %vm314, %v312
  %316 = vst.msk [vmem:[%s3 + $0x8] sm:$0xff] %vm314, %v313
  // Predicated region
  $region14: #{net_forward.4} parent=0 // pred_check
    _
  $region15: #{net_forward.4} parent=0 // pred_check_branch
    %318 = sbr.rel (0) target = $region17
  $region16: #{net_forward.4} parent=0 // pred_region
    _
  $region17: #{net_forward.4} parent=0 // pred_fallthru
    _
  // Predicated region
  $region18: #{net_forward.4} parent=0 // pred_check
    _
  $region19: #{net_forward.4} parent=0 // pred_check_branch
    %320 = sbr.rel (0) target = $region21
  $region20: #{net_forward.4} parent=0 // pred_region
    _
  $region21: #{net_forward.4} parent=0 // pred_fallthru
    _

// kernel: net_forward.5
$region0: #{net_forward.5}
  #allocation0 [shape = 'u32[]', space=smem, size = 0x4, offset = 0x4, fixed_abs, tag = 'smem constant byte address 0x4 - core index']
  #allocation1 [shape = 'u32[72,128]{1,0:T(1,128)}', space=vmem, size = 0x9000, scoped, tag = 'internal scratch']
  %s0 = inlined_call_operand.vmem [shape: f32[2,400], index: 0, kind: input, shape index: {}]
  %s1 = inlined_call_operand.vmem [shape: f32[400,128], index: 1, kind: input, shape index: {}]
  %s2 = inlined_call_operand.vmem [shape: f32[1,128], index: 2, kind: input, shape index: {}]
  %s3 = inlined_call_operand.vmem [shape: f32[128,128], index: 3, kind: input, shape index: {}]
  %s4 = inlined_call_operand.vmem [shape: f32[1,128], index: 4, kind: input, shape index: {}]
  %s5 = inlined_call_operand.vmem [shape: f32[128,128], index: 5, kind: input, shape index: {}]
  %s6 = inlined_call_operand.vmem [shape: f32[1,128], index: 6, kind: input, shape index: {}]
  %s7 = inlined_call_operand.hbm [shape: f32[2,10], index: 7, kind: output, shape index: {}]
  %s8 = sld [smem:[#allocation0]]
  $region38: #{net_forward.5} parent=0
    _
  %s10 = ssub.s32 1, %s8
  %s11 = scalar_select 0, %s10, %s8
  $region1: #{net_forward.5} parent=0
    #allocation2 [shape = 'u8[1024]{0}', space=vmem, size = 0x400, scoped, tag = 'output window, operand 0, single buffered']
    #allocation3 [shape = 's32[1]{0}', space=sflag, size = 0x4, scoped, tag = 'scoped memory for net_forward.5']
    %12 = vsyncpa [#allocation3], 0
    // Predicated region
    $region2: #{net_forward.5} parent=1 // pred_check
      _
    $region3: #{net_forward.5} parent=1 // pred_check_branch
      %14 = sbr.rel (0) target = $region5
    $region4: #{net_forward.5} parent=1 // pred_region
      _
    $region5: #{net_forward.5} parent=1 // pred_fallthru
      _
    // Predicated region
    $region6: #{net_forward.5} parent=1 // pred_check
      _
    $region7: #{net_forward.5} parent=1 // pred_check_branch
      %16 = sbr.rel (0) target = $region9
    $region8: #{net_forward.5} parent=1 // pred_region
      _
    $region9: #{net_forward.5} parent=1 // pred_fallthru
      _
    // Predicated region
    $region10: #{net_forward.5} parent=1 // pred_check
      _
    $region11: #{net_forward.5} parent=1 // pred_check_branch
      %18 = sbr.rel (0) target = $region13
    $region12: #{net_forward.5} parent=1 // pred_region
      _
    $region13: #{net_forward.5} parent=1 // pred_fallthru
      _
    // Predicated region
    $region14: #{net_forward.5} parent=1 // pred_check
      _
    $region15: #{net_forward.5} parent=1 // pred_check_branch
      %20 = sbr.rel (0) target = $region17
    $region16: #{net_forward.5} parent=1 // pred_region
      _
    $region17: #{net_forward.5} parent=1 // pred_fallthru
      _
    // Predicated region
    $region18: #{net_forward.5} parent=1 // pred_check
      _
    $region19: #{net_forward.5} parent=1 // pred_check_branch
      %22 = sbr.rel (0) target = $region21
    $region20: #{net_forward.5} parent=1 // pred_region
      _
    $region21: #{net_forward.5} parent=1 // pred_fallthru
      _
    // Predicated region
    $region22: #{net_forward.5} parent=1 // pred_check
      _
    $region23: #{net_forward.5} parent=1 // pred_check_branch
      %24 = sbr.rel (0) target = $region25
    $region24: #{net_forward.5} parent=1 // pred_region
      _
    $region25: #{net_forward.5} parent=1 // pred_fallthru
      _
    // Predicated region
    $region26: #{net_forward.5} parent=1 // pred_check
      _
    $region27: #{net_forward.5} parent=1 // pred_check_branch
      %26 = sbr.rel (0) target = $region29
    $region28: #{net_forward.5} parent=1 // pred_region
      _
    $region29: #{net_forward.5} parent=1 // pred_fallthru
      _
    %v27 = vld [vmem:[%s0] sm:$0xff]
    %v28 = vld [vmem:[%s1] sm:$0xff]
    %v29 = vld [vmem:[%s1 + $0x8] sm:$0xff]
    %v30 = vld [vmem:[%s1 + $0x10] sm:$0xff]
    %v31 = vld [vmem:[%s1 + $0x18] sm:$0xff]
    %v32 = vld [vmem:[%s1 + $0x20] sm:$0xff]
    %v33 = vld [vmem:[%s1 + $0x28] sm:$0xff]
    %v34 = vld [vmem:[%s1 + $0x30] sm:$0xff]
    %v35 = vld [vmem:[%s1 + $0x38] sm:$0xff]
    %v36 = vld [vmem:[%s1 + $0x40] sm:$0xff]
    %v37 = vld [vmem:[%s1 + $0x48] sm:$0xff]
    %v38 = vld [vmem:[%s1 + $0x50] sm:$0xff]
    %v39 = vld [vmem:[%s1 + $0x58] sm:$0xff]
    %v40 = vld [vmem:[%s1 + $0x60] sm:$0xff]
    %v41 = vld [vmem:[%s1 + $0x68] sm:$0xff]
    %v42 = vld [vmem:[%s1 + $0x70] sm:$0xff]
    %v43 = vld [vmem:[%s1 + $0x78] sm:$0xff]
    %v44 = vld [vmem:[%s1 + $0x80] sm:$0xff]
    %v45 = vld [vmem:[%s1 + $0x88] sm:$0xff]
    %v46 = vld [vmem:[%s1 + $0x90] sm:$0xff]
    %v47 = vld [vmem:[%s1 + $0x98] sm:$0xff]
    %v48 = vld [vmem:[%s1 + $0xa0] sm:$0xff]
    %v49 = vld [vmem:[%s1 + $0xa8] sm:$0xff]
    %v50 = vld [vmem:[%s1 + $0xb0] sm:$0xff]
    %v51 = vld [vmem:[%s1 + $0xb8] sm:$0xff]
    %v52 = vld [vmem:[%s1 + $0xc0] sm:$0xff]
    %v53 = vld [vmem:[%s1 + $0xc8] sm:$0xff]
    %v54 = vld [vmem:[%s1 + $0xd0] sm:$0xff]
    %v55 = vld [vmem:[%s1 + $0xd8] sm:$0xff]
    %v56 = vld [vmem:[%s1 + $0xe0] sm:$0xff]
    %v57 = vld [vmem:[%s1 + $0xe8] sm:$0xff]
    %v58 = vld [vmem:[%s1 + $0xf0] sm:$0xff]
    %v59 = vld [vmem:[%s1 + $0xf8] sm:$0xff]
    %v60 = vld [vmem:[%s1 + $0x100] sm:$0xff]
    %v61 = vld [vmem:[%s1 + $0x108] sm:$0xff]
    %v62 = vld [vmem:[%s1 + $0x110] sm:$0xff]
    %v63 = vld [vmem:[%s1 + $0x118] sm:$0xff]
    %v64 = vld [vmem:[%s1 + $0x120] sm:$0xff]
    %v65 = vld [vmem:[%s1 + $0x128] sm:$0xff]
    %v66 = vld [vmem:[%s1 + $0x130] sm:$0xff]
    %v67 = vld [vmem:[%s1 + $0x138] sm:$0xff]
    %v68 = vld [vmem:[%s1 + $0x140] sm:$0xff]
    %v69 = vld [vmem:[%s1 + $0x148] sm:$0xff]
    %v70 = vld [vmem:[%s1 + $0x150] sm:$0xff]
    %v71 = vld [vmem:[%s1 + $0x158] sm:$0xff]
    %v72 = vld [vmem:[%s1 + $0x160] sm:$0xff]
    %v73 = vld [vmem:[%s1 + $0x168] sm:$0xff]
    %v74 = vld [vmem:[%s1 + $0x170] sm:$0xff]
    %v75 = vld [vmem:[%s1 + $0x178] sm:$0xff]
    %v76 = vld [vmem:[%s1 + $0x180] sm:$0xff]
    %v77 = vld [vmem:[%s1 + $0x188] sm:$0xff]
    %v78 = vld [vmem:[%s2] sm:$0x1]
    %v80 = vperm.slane %v78, 0
    %83 = vst [vmem:[#allocation1] ss:$4 sm:$0xff] %v27
    %v84 = vld.sshfl [vmem:[#allocation1] sm:$0xff pattern:$0x73625140]
    %v85 = vld.sshfl [vmem:[#allocation1 + $0x8] sm:$0xff pattern:$0x73625140]
    %v86 = vld.sshfl [vmem:[#allocation1 + $0x10] sm:$0xff pattern:$0x73625140]
    %v87 = vld.sshfl [vmem:[#allocation1 + $0x18] sm:$0xff pattern:$0x73625140]
    %vm91 = vcmask 130048
    %v92 = vsel %vm91, %v87, 0
    %94 = vmatpush.msra.mxu0 %v43
    %95 = vmatpush.msra.mxu0 %v42
    %96 = vmatpush.msra.mxu0 %v41
    %97 = vmatpush.msra.mxu0 %v40
    %98 = vmatpush.msra.mxu0 %v39
    %99 = vmatpush.msra.mxu0 %v38
    %100 = vmatpush.msra.mxu0 %v37
    %101 = vmatpush.msra.mxu0 %v36
    %102 = vmatpush.msra.mxu0 %v35
    %103 = vmatpush.msra.mxu0 %v34
    %104 = vmatpush.msra.mxu0 %v33
    %105 = vmatpush.msra.mxu0 %v32
    %106 = vmatpush.msra.mxu0 %v31
    %107 = vmatpush.msra.mxu0 %v30
    %108 = vmatpush.msra.mxu0 %v29
    %109 = vmatpush.msra.mxu0 %v28
    %110 = vmatmul.f32.gmra.mxu0 %v84
    %v111 = vpop.f32.mrf.mxu0
    %v112 = vadd.f32 %v80, %v111
    %113 = vdwg.mxu0
    %114 = vmatpush.msra.mxu0 %v59
    %115 = vmatpush.msra.mxu0 %v58
    %116 = vmatpush.msra.mxu0 %v57
    %117 = vmatpush.msra.mxu0 %v56
    %118 = vmatpush.msra.mxu0 %v55
    %119 = vmatpush.msra.mxu0 %v54
    %120 = vmatpush.msra.mxu0 %v53
    %121 = vmatpush.msra.mxu0 %v52
    %122 = vmatpush.msra.mxu0 %v51
    %123 = vmatpush.msra.mxu0 %v50
    %124 = vmatpush.msra.mxu0 %v49
    %125 = vmatpush.msra.mxu0 %v48
    %126 = vmatpush.msra.mxu0 %v47
    %127 = vmatpush.msra.mxu0 %v46
    %128 = vmatpush.msra.mxu0 %v45
    %129 = vmatpush.msra.mxu0 %v44
    %130 = vmatmul.f32.gmra.mxu0 %v85
    %v131 = vpop.f32.mrf.mxu0
    %v132 = vadd.f32 %v112, %v131
    %133 = vdwg.mxu0
    %134 = vmatpush.msra.mxu0 %v75
    %135 = vmatpush.msra.mxu0 %v74
    %136 = vmatpush.msra.mxu0 %v73
    %137 = vmatpush.msra.mxu0 %v72
    %138 = vmatpush.msra.mxu0 %v71
    %139 = vmatpush.msra.mxu0 %v70
    %140 = vmatpush.msra.mxu0 %v69
    %141 = vmatpush.msra.mxu0 %v68
    %142 = vmatpush.msra.mxu0 %v67
    %143 = vmatpush.msra.mxu0 %v66
    %144 = vmatpush.msra.mxu0 %v65
    %145 = vmatpush.msra.mxu0 %v64
    %146 = vmatpush.msra.mxu0 %v63
    %147 = vmatpush.msra.mxu0 %v62
    %148 = vmatpush.msra.mxu0 %v61
    %149 = vmatpush.msra.mxu0 %v60
    %150 = vmatmul.f32.gmra.mxu0 %v86
    %v151 = vpop.f32.mrf.mxu0
    %v152 = vadd.f32 %v132, %v151
    %153 = vdwg.mxu0
    %154 = vmatpush.msra.mxu0 0.0
    %155 = vmatpush.msra.mxu0 0.0
    %156 = vmatpush.msra.mxu0 0.0
    %157 = vmatpush.msra.mxu0 0.0
    %158 = vmatpush.msra.mxu0 0.0
    %159 = vmatpush.msra.mxu0 0.0
    %160 = vmatpush.msra.mxu0 0.0
    %161 = vmatpush.msra.mxu0 0.0
    %162 = vmatpush.msra.mxu0 0.0
    %163 = vmatpush.msra.mxu0 0.0
    %164 = vmatpush.msra.mxu0 0.0
    %165 = vmatpush.msra.mxu0 0.0
    %166 = vmatpush.msra.mxu0 0.0
    %167 = vmatpush.msra.mxu0 0.0
    %168 = vmatpush.msra.mxu0 %v77
    %169 = vmatpush.msra.mxu0 %v76
    %170 = vmatmul.f32.gmra.mxu0 %v92
    %v171 = vpop.f32.mrf.mxu0
    %v172 = vadd.f32 %v152, %v171
    %173 = vdwg.mxu0
    %v174 = vmax.f32 %v172, 0.0
    %v175 = vld [vmem:[%s3] sm:$0xff]
    %v176 = vld [vmem:[%s3 + $0x8] sm:$0xff]
    %v177 = vld [vmem:[%s3 + $0x10] sm:$0xff]
    %v178 = vld [vmem:[%s3 + $0x18] sm:$0xff]
    %v179 = vld [vmem:[%s3 + $0x20] sm:$0xff]
    %v180 = vld [vmem:[%s3 + $0x28] sm:$0xff]
    %v181 = vld [vmem:[%s3 + $0x30] sm:$0xff]
    %v182 = vld [vmem:[%s3 + $0x38] sm:$0xff]
    %v183 = vld [vmem:[%s3 + $0x40] sm:$0xff]
    %v184 = vld [vmem:[%s3 + $0x48] sm:$0xff]
    %v185 = vld [vmem:[%s3 + $0x50] sm:$0xff]
    %v186 = vld [vmem:[%s3 + $0x58] sm:$0xff]
    %v187 = vld [vmem:[%s3 + $0x60] sm:$0xff]
    %v188 = vld [vmem:[%s3 + $0x68] sm:$0xff]
    %v189 = vld [vmem:[%s3 + $0x70] sm:$0xff]
    %v190 = vld [vmem:[%s3 + $0x78] sm:$0xff]
    %v191 = vld [vmem:[%s4] sm:$0x1]
    %v193 = vperm.slane %v191, 0
    %195 = vmatpush.msra.mxu0 %v190
    %196 = vmatpush.msra.mxu0 %v189
    %197 = vmatpush.msra.mxu0 %v188
    %198 = vmatpush.msra.mxu0 %v187
    %199 = vmatpush.msra.mxu0 %v186
    %200 = vmatpush.msra.mxu0 %v185
    %201 = vmatpush.msra.mxu0 %v184
    %202 = vmatpush.msra.mxu0 %v183
    %203 = vmatpush.msra.mxu0 %v182
    %204 = vmatpush.msra.mxu0 %v181
    %205 = vmatpush.msra.mxu0 %v180
    %206 = vmatpush.msra.mxu0 %v179
    %207 = vmatpush.msra.mxu0 %v178
    %208 = vmatpush.msra.mxu0 %v177
    %209 = vmatpush.msra.mxu0 %v176
    %210 = vmatpush.msra.mxu0 %v175
    %211 = vmatmul.f32.gmra.mxu0 %v174
    %v212 = vpop.f32.mrf.mxu0
    %v213 = vadd.f32 %v193, %v212
    %214 = vdwg.mxu0
    %v215 = vmax.f32 %v213, 0.0
    %v216 = vld [vmem:[%s5] sm:$0xff]
    %v217 = vld [vmem:[%s5 + $0x8] sm:$0xff]
    %v218 = vld [vmem:[%s5 + $0x10] sm:$0xff]
    %v219 = vld [vmem:[%s5 + $0x18] sm:$0xff]
    %v220 = vld [vmem:[%s5 + $0x20] sm:$0xff]
    %v221 = vld [vmem:[%s5 + $0x28] sm:$0xff]
    %v222 = vld [vmem:[%s5 + $0x30] sm:$0xff]
    %v223 = vld [vmem:[%s5 + $0x38] sm:$0xff]
    %v224 = vld [vmem:[%s5 + $0x40] sm:$0xff]
    %v225 = vld [vmem:[%s5 + $0x48] sm:$0xff]
    %v226 = vld [vmem:[%s5 + $0x50] sm:$0xff]
    %v227 = vld [vmem:[%s5 + $0x58] sm:$0xff]
    %v228 = vld [vmem:[%s5 + $0x60] sm:$0xff]
    %v229 = vld [vmem:[%s5 + $0x68] sm:$0xff]
    %v230 = vld [vmem:[%s5 + $0x70] sm:$0xff]
    %v231 = vld [vmem:[%s5 + $0x78] sm:$0xff]
    %v232 = vld [vmem:[%s6] sm:$0x1]
    %v234 = vperm.slane %v232, 0
    %236 = vmatpush.msra.mxu0 %v231
    %237 = vmatpush.msra.mxu0 %v230
    %238 = vmatpush.msra.mxu0 %v229
    %239 = vmatpush.msra.mxu0 %v228
    %240 = vmatpush.msra.mxu0 %v227
    %241 = vmatpush.msra.mxu0 %v226
    %242 = vmatpush.msra.mxu0 %v225
    %243 = vmatpush.msra.mxu0 %v224
    %244 = vmatpush.msra.mxu0 %v223
    %245 = vmatpush.msra.mxu0 %v222
    %246 = vmatpush.msra.mxu0 %v221
    %247 = vmatpush.msra.mxu0 %v220
    %248 = vmatpush.msra.mxu0 %v219
    %249 = vmatpush.msra.mxu0 %v218
    %250 = vmatpush.msra.mxu0 %v217
    %251 = vmatpush.msra.mxu0 %v216
    %252 = vmatmul.f32.gmra.mxu0 %v215
    %v253 = vpop.f32.mrf.mxu0
    %v254 = vadd.f32 %v234, %v253
    %255 = vdwg.mxu0
    %vm256 = vcmask 74752
    %257 = vst.msk [vmem:[#allocation2] sm:$0x3] %vm256, %v254
    // Predicated region
    $region30: #{net_forward.5} parent=1 // pred_check
      _
    $region31: #{net_forward.5} parent=1 // pred_check_branch
      %259 = sbr.rel (0) target = $region33
    $region32: #{net_forward.5} parent=1 // pred_region
      %261 = vsyncadd [#allocation3], 0
      %s263 = sshll.u32 [#allocation2], 4
      %s264 = int_to_ptr.vmem [resolvable:$true] %s263
      %s265 = sshll.u32 %s7, 4
      %s266 = int_to_ptr.hbm [resolvable:$true] %s265
      %268 = dma.vmem_to_hbm [thread:$0]  %s264, 32, %s266, [#allocation3]
    $region33: #{net_forward.5} parent=1 // pred_fallthru
      _
    // Predicated region
    $region34: #{net_forward.5} parent=1 // pred_check
      _
    $region35: #{net_forward.5} parent=1 // pred_check_branch
      %270 = sbr.rel (0) target = $region37
    $region36: #{net_forward.5} parent=1 // pred_region
      %272 = dma.done [#allocation3], 32
    $region37: #{net_forward.5} parent=1 // pred_fallthru
      _
    %273 = vsyncpa [#allocation3], 1

</llo_original>
